<compile_context>
chip_gen: v5e
topology: v5e:2x2
jax: 0.10.0
libtpu: 0.0.40
codegen_flags: <defaults>
</compile_context>

<pallas_src>
import numpy as np
import jax
import jax.numpy as jnp
from jax import lax
from jax.experimental import pallas as pl
from jax.experimental.pallas import tpu as pltpu

RC, RS = 2, 4
CENTER_K = RC * 6 + 1      # 13
SURROUND_K = RS * 6 + 1    # 25
GAUSS_K = 9
GAUSS_SIGMA = 3.0
SURROUND_SCALE = 0.85 * (RC / RS) ** 2   # folded into the surround band matrix (host)

TILE_H = 64                # DoG row tile -> grid=(3, H//TILE_H) balances v7x megacore


# ----------------------- deterministic parameter init -----------------------
def center_1d(rc=RC, size=CENTER_K):
    i = np.arange(size, dtype=np.float64)
    d = np.abs(i - np.floor(size / 2)) / rc
    return np.exp(-d ** 2)                       # 2D kernel = outer(c, c)


def surround_1d(rs=RS, size=SURROUND_K):
    i = np.arange(size, dtype=np.float64)
    d = np.abs(i - np.floor(size / 2)) / rs
    return np.exp(-d ** 2)                       # 2D = SURROUND_SCALE * outer(s, s)


def gaussian_1d(sigma=GAUSS_SIGMA, size=GAUSS_K):
    # cv2.getGaussianKernel(size, sigma), computed directly.
    i = np.arange(size, dtype=np.float64)
    g = np.exp(-((i - (size - 1) / 2.0) ** 2) / (2.0 * sigma ** 2))
    return g / g.sum()                           # 2D = outer(g, g)


def box_1d():
    return np.ones(3, dtype=np.float64) / 3.0    # 2D = ones(3,3)/9


def band_matrix(k1d, n):
    """[n, n] symmetric Toeplitz band: M[i, r] = k1d[r - i + pad] (zero-pad 'same').

    For a separable kernel k2d = outer(kh, kw), the zero-padded "same" conv is
    exactly  y = band(kh, H) @ x @ band(kw, W)."""
    K = len(k1d)
    pad = K // 2
    M = np.zeros((n, n), dtype=np.float32)
    for i in range(n):
        lo, hi = max(0, i - pad), min(n, i + pad + 1)
        for r in range(lo, hi):
            M[i, r] = k1d[r - i + pad]
    return M


# --------------------------------- kernels ----------------------------------
def dog_kernel(x_ref, csh_ref, csw_ref, out_ref):
    """Difference-of-Gaussians contrast for one channel row-tile, on the MXU.

    x_ref:   (H, W)      channel image (full rows; left band needs all of H)
    csh_ref: (2T, H)     stacked [center; surround] rows of this tile (bf16)
    csw_ref: (2W, 2W)    blockdiag(cw, SURROUND_SCALE*sw)              (bf16)
    out_ref: (T, W)      contrast tile
    """
    x = x_ref[...].astype(jnp.bfloat16)
    # Left pass: one matmul covers both the center and surround row filters.
    left = jnp.dot(csh_ref[...], x,
                   preferred_element_type=jnp.float32).astype(jnp.bfloat16)  # (2T, W)
    t = left.shape[0] // 2
    # Concat the two halves along lanes and hit the 256-wide block-diagonal
    # right band with a single matmul: result = [Rc | scale*Rs].
    stacked = jnp.concatenate([left[:t], left[t:]], axis=1)                  # (T, 2W)
    res = jnp.dot(stacked, csw_ref[...],
                  preferred_element_type=jnp.float32)                        # (T, 2W)
    w = res.shape[1] // 2
    rc = res[:, :w]
    rs = res[:, w:]                               # surround scale already folded in
    # (Rc - scale*Rs) / Rc == 1 - (scale*Rs) / Rc.  Exact reciprocal to match
    # torch.div; rc is unguarded (same 0-denominator semantics as the original).
    out_ref[...] = 1.0 - rs * pl.reciprocal(rc, approx=False)


def spectral_kernel(re_ref, im_ref, bh_ref, bw_ref, out_re_ref, out_im_ref):
    """Spectral-residual rescaling of the FFT.

    mag/logmag are derived in-kernel from re/im (EUP log/rsqrt), and the 3x3
    box conv of the log-magnitude is two band matmuls."""
    re = re_ref[...]
    im = im_ref[...]
    mag2 = re * re + im * im
    logmag = 0.5 * jnp.log(mag2)                  # log(|fft|); -inf iff mag==0 (as torch)
    box = jnp.dot(
        jnp.dot(bh_ref[...], logmag.astype(jnp.bfloat16),
                preferred_element_type=jnp.float32).astype(jnp.bfloat16),
        bw_ref[...], preferred_element_type=jnp.float32)
    box = jnp.clip(box, 0.0, 255.0)               # matches torch.clip(..., 0, 255)
    sr = jnp.exp(logmag - box)                    # spectral residual
    scale = sr * lax.rsqrt(mag2)                  # sr / |fft|, rsqrt on EUP
    out_re_ref[...] = re * scale
    out_im_ref[...] = im * scale


def gauss_norm_kernel(sre_ref, sim_ref, gh_ref, gw_ref, out_ref):
    """|ifft|^2 (fused) + 9x9 same-padded Gaussian blur + min-max normalization."""
    sre = sre_ref[...]
    sim = sim_ref[...]
    sp = (sre * sre + sim * sim).astype(jnp.bfloat16)
    g = jnp.dot(
        jnp.dot(gh_ref[...], sp, preferred_element_type=jnp.float32).astype(jnp.bfloat16),
        gw_ref[...], preferred_element_type=jnp.float32)
    gmin = jnp.min(g)
    gmax = jnp.max(g)
    # Scalar reciprocal + broadcast multiply instead of a per-element divide.
    out_ref[...] = (g - gmin) * (1.0 / (gmax - gmin))


# -------------------------------- wrappers -----------------------------------
def dog_contrast(img, csh_tiled, csw):
    C, H, W = img.shape
    nj = csh_tiled.shape[0]
    tile_h = H // nj
    return pl.pallas_call(
        dog_kernel,
        out_shape=jax.ShapeDtypeStruct((C, H, W), jnp.float32),
        grid=(C, nj),
        in_specs=[
            pl.BlockSpec((pl.Squeezed(), H, W), lambda c, j: (c, 0, 0)),
            pl.BlockSpec((pl.Squeezed(), 2 * tile_h, H), lambda c, j: (j, 0, 0)),
            pl.BlockSpec((2 * W, 2 * W), lambda c, j: (0, 0)),
        ],
        out_specs=pl.BlockSpec((pl.Squeezed(), tile_h, W), lambda c, j: (c, j, 0)),
        compiler_params=pltpu.CompilerParams(
            # 3 channels x H/TILE_H row tiles, all independent -> balanced megacore.
            dimension_semantics=("parallel", "parallel")),
    )(img, csh_tiled, csw)


def saliency_fn(gray_img, bh, bw, gh, gw):
    H, W = gray_img.shape
    x = gray_img * 255.0
    # TODO(synk): FFT/IFFT have no Pallas primitive; computed with jnp.fft (XLA).
    f = jnp.fft.fft2(x)
    re = jnp.real(f).astype(jnp.float32)
    im = jnp.imag(f).astype(jnp.float32)

    new_re, new_im = pl.pallas_call(
        spectral_kernel,
        out_shape=(jax.ShapeDtypeStruct((H, W), jnp.float32),
                   jax.ShapeDtypeStruct((H, W), jnp.float32)),
        in_specs=[pl.BlockSpec(memory_space=pltpu.MemorySpace.VMEM)] * 4,
        out_specs=(pl.BlockSpec(memory_space=pltpu.MemorySpace.VMEM),
                   pl.BlockSpec(memory_space=pltpu.MemorySpace.VMEM)),
    )(re, im, bh, bw)

    s = jnp.fft.ifft2(lax.complex(new_re, new_im))
    s_re = jnp.real(s).astype(jnp.float32)
    s_im = jnp.imag(s).astype(jnp.float32)

    sal = pl.pallas_call(
        gauss_norm_kernel,
        out_shape=jax.ShapeDtypeStruct((H, W), jnp.float32),
        in_specs=[pl.BlockSpec(memory_space=pltpu.MemorySpace.VMEM)] * 4,
        out_specs=pl.BlockSpec(memory_space=pltpu.MemorySpace.VMEM),
    )(s_re, s_im, gh, gw)
    return sal


@jax.jit
def cal_contrast_forward(img, csh_tiled, csw, bh, bw, gh, gw):
    # img: (3, H, W) float32, channel order [R, G, B] as indexed by the module.
    gray = 0.299 * img[0] + 0.587 * img[1] + 0.114 * img[2]
    sal = saliency_fn(gray, bh, bw, gh, gw)
    # contrast_img = cat([DOG(R), DOG(G), DOG(B)]) == per-channel DOG of img.
    contrast_img = dog_contrast(img, csh_tiled, csw)
    return contrast_img, 0, sal


# ---------------------------------- main -------------------------------------
if __name__ == "__main__":
    key = jax.random.PRNGKey(0)
    H = W = 128   # lane-dense (W % 128 == 0)
    img = jax.random.uniform(key, (3, H, W), jnp.float32, minval=0.1, maxval=1.0)

    c1 = center_1d()
    s1 = surround_1d()
    g1 = gaussian_1d()
    b1 = box_1d()

    # Symmetric Toeplitz band matrices (fold in zero "same" padding).
    ch_np = band_matrix(c1, H)
    cw_np = band_matrix(c1, W)
    sh_np = band_matrix(s1, H)
    sw_np = band_matrix(s1, W) * np.float32(SURROUND_SCALE)   # scale folded on host

    # Row-tiled stacked left band: block j = [center rows j*T:(j+1)T ; surround rows ...].
    assert H % TILE_H == 0
    nj = H // TILE_H
    csh_tiled_np = np.stack(
        [np.concatenate([ch_np[j * TILE_H:(j + 1) * TILE_H],
                         sh_np[j * TILE_H:(j + 1) * TILE_H]], axis=0)
         for j in range(nj)], axis=0)                          # (nj, 2*TILE_H, H)

    # Block-diagonal right band: blockdiag(cw, SURROUND_SCALE*sw)  (2W, 2W).
    csw_np = np.zeros((2 * W, 2 * W), dtype=np.float32)
    csw_np[:W, :W] = cw_np
    csw_np[W:, W:] = sw_np

    # bf16 matmul inputs, f32 accumulation in-kernel.
    csh_tiled = jnp.asarray(csh_tiled_np, dtype=jnp.bfloat16)
    csw = jnp.asarray(csw_np, dtype=jnp.bfloat16)
    bh = jnp.asarray(band_matrix(b1, H), dtype=jnp.bfloat16)
    bw = jnp.asarray(band_matrix(b1, W), dtype=jnp.bfloat16)
    gh = jnp.asarray(band_matrix(g1, H), dtype=jnp.bfloat16)
    gw = jnp.asarray(band_matrix(g1, W), dtype=jnp.bfloat16)

    contrast_img, zero, sal = cal_contrast_forward(
        img, csh_tiled, csw, bh, bw, gh, gw)
    jax.block_until_ready((contrast_img, sal))

    assert contrast_img.shape == (3, H, W)
    assert sal.shape == (H, W)
    assert bool(jnp.all(jnp.isfinite(contrast_img)))
    assert bool(jnp.all(jnp.isfinite(sal)))
    print("KERNEL_OK")
</pallas_src>

<mosaic_0001>
module attributes {stable_mosaic.version = 11 : i64} {
  func.func @spectral_kernel(%arg0: memref<128x128xf32, #tpu.memory_space<vmem>>, %arg1: memref<128x128xf32, #tpu.memory_space<vmem>>, %arg2: memref<128x128xbf16, #tpu.memory_space<vmem>>, %arg3: memref<128x128xbf16, #tpu.memory_space<vmem>>, %arg4: memref<128x128xf32, #tpu.memory_space<vmem>>, %arg5: memref<128x128xf32, #tpu.memory_space<vmem>>) attributes {dimension_semantics = [], scalar_prefetch = 0 : i64, scratch_operands = 0 : i64, tpu.core_type = #tpu.core_type<tc>} {
    %c0 = arith.constant 0 : index
    %c0_0 = arith.constant 0 : index
    %0 = vector.load %arg0[%c0, %c0_0] : memref<128x128xf32, #tpu.memory_space<vmem>>, vector<128x128xf32>
    %c0_1 = arith.constant 0 : index
    %c0_2 = arith.constant 0 : index
    %1 = vector.load %arg1[%c0_1, %c0_2] : memref<128x128xf32, #tpu.memory_space<vmem>>, vector<128x128xf32>
    %2 = arith.mulf %0, %0 : vector<128x128xf32>
    %3 = arith.mulf %1, %1 : vector<128x128xf32>
    %4 = arith.addf %2, %3 : vector<128x128xf32>
    %5 = math.log %4 : vector<128x128xf32>
    %cst = arith.constant 5.000000e-01 : f32
    %6 = vector.broadcast %cst : f32 to vector<128x128xf32>
    %7 = arith.mulf %6, %5 : vector<128x128xf32>
    %c0_3 = arith.constant 0 : index
    %c0_4 = arith.constant 0 : index
    %8 = vector.load %arg2[%c0_3, %c0_4] : memref<128x128xbf16, #tpu.memory_space<vmem>>, vector<128x128xbf16>
    %9 = arith.truncf %7 : vector<128x128xf32> to vector<128x128xbf16>
    %cst_5 = arith.constant dense<0.000000e+00> : vector<128x128xf32>
    %10 = tpu.matmul %8, %9, %cst_5 {dimension_numbers = #tpu.dot_dimension_numbers<[1], [0], [0], [1], [0, 0, 1, 1], [], []>} : vector<128x128xbf16>, vector<128x128xbf16>, vector<128x128xf32> -> vector<128x128xf32>
    %11 = arith.truncf %10 : vector<128x128xf32> to vector<128x128xbf16>
    %c0_6 = arith.constant 0 : index
    %c0_7 = arith.constant 0 : index
    %12 = vector.load %arg3[%c0_6, %c0_7] : memref<128x128xbf16, #tpu.memory_space<vmem>>, vector<128x128xbf16>
    %cst_8 = arith.constant dense<0.000000e+00> : vector<128x128xf32>
    %13 = tpu.matmul %11, %12, %cst_8 {dimension_numbers = #tpu.dot_dimension_numbers<[1], [0], [0], [1], [0, 0, 1, 1], [], []>} : vector<128x128xbf16>, vector<128x128xbf16>, vector<128x128xf32> -> vector<128x128xf32>
    %cst_9 = arith.constant 0.000000e+00 : f32
    %cst_10 = arith.constant 2.550000e+02 : f32
    %14 = vector.broadcast %cst_9 : f32 to vector<128x128xf32>
    %15 = arith.maximumf %14, %13 : vector<128x128xf32>
    %16 = vector.broadcast %cst_10 : f32 to vector<128x128xf32>
    %17 = arith.minimumf %16, %15 : vector<128x128xf32>
    %18 = arith.subf %7, %17 : vector<128x128xf32>
    %19 = math.exp %18 : vector<128x128xf32>
    %20 = math.rsqrt %4 : vector<128x128xf32>
    %21 = arith.mulf %19, %20 : vector<128x128xf32>
    %22 = arith.mulf %0, %21 : vector<128x128xf32>
    %c0_11 = arith.constant 0 : index
    %c0_12 = arith.constant 0 : index
    %23 = vector.load %arg4[%c0_11, %c0_12] : memref<128x128xf32, #tpu.memory_space<vmem>>, vector<128x128xf32>
    tpu.vector_store %arg4[%c0_11, %c0_12], %22 {strides = array<i32>} : memref<128x128xf32, #tpu.memory_space<vmem>>, vector<128x128xf32>,
    %24 = arith.mulf %1, %21 : vector<128x128xf32>
    %c0_13 = arith.constant 0 : index
    %c0_14 = arith.constant 0 : index
    %25 = vector.load %arg5[%c0_13, %c0_14] : memref<128x128xf32, #tpu.memory_space<vmem>>, vector<128x128xf32>
    tpu.vector_store %arg5[%c0_13, %c0_14], %24 {strides = array<i32>} : memref<128x128xf32, #tpu.memory_space<vmem>>, vector<128x128xf32>,
    return
  }
}

module attributes {stable_mosaic.version = 11 : i64} {
  func.func @gauss_norm_kernel(%arg0: memref<128x128xf32, #tpu.memory_space<vmem>>, %arg1: memref<128x128xf32, #tpu.memory_space<vmem>>, %arg2: memref<128x128xbf16, #tpu.memory_space<vmem>>, %arg3: memref<128x128xbf16, #tpu.memory_space<vmem>>, %arg4: memref<128x128xf32, #tpu.memory_space<vmem>>) attributes {dimension_semantics = [], scalar_prefetch = 0 : i64, scratch_operands = 0 : i64, tpu.core_type = #tpu.core_type<tc>} {
    %c0 = arith.constant 0 : index
    %c0_0 = arith.constant 0 : index
    %0 = vector.load %arg0[%c0, %c0_0] : memref<128x128xf32, #tpu.memory_space<vmem>>, vector<128x128xf32>
    %c0_1 = arith.constant 0 : index
    %c0_2 = arith.constant 0 : index
    %1 = vector.load %arg1[%c0_1, %c0_2] : memref<128x128xf32, #tpu.memory_space<vmem>>, vector<128x128xf32>
    %2 = arith.mulf %0, %0 : vector<128x128xf32>
    %3 = arith.mulf %1, %1 : vector<128x128xf32>
    %4 = arith.addf %2, %3 : vector<128x128xf32>
    %5 = arith.truncf %4 : vector<128x128xf32> to vector<128x128xbf16>
    %c0_3 = arith.constant 0 : index
    %c0_4 = arith.constant 0 : index
    %6 = vector.load %arg2[%c0_3, %c0_4] : memref<128x128xbf16, #tpu.memory_space<vmem>>, vector<128x128xbf16>
    %cst = arith.constant dense<0.000000e+00> : vector<128x128xf32>
    %7 = tpu.matmul %6, %5, %cst {dimension_numbers = #tpu.dot_dimension_numbers<[1], [0], [0], [1], [0, 0, 1, 1], [], []>} : vector<128x128xbf16>, vector<128x128xbf16>, vector<128x128xf32> -> vector<128x128xf32>
    %8 = arith.truncf %7 : vector<128x128xf32> to vector<128x128xbf16>
    %c0_5 = arith.constant 0 : index
    %c0_6 = arith.constant 0 : index
    %9 = vector.load %arg3[%c0_5, %c0_6] : memref<128x128xbf16, #tpu.memory_space<vmem>>, vector<128x128xbf16>
    %cst_7 = arith.constant dense<0.000000e+00> : vector<128x128xf32>
    %10 = tpu.matmul %8, %9, %cst_7 {dimension_numbers = #tpu.dot_dimension_numbers<[1], [0], [0], [1], [0, 0, 1, 1], [], []>} : vector<128x128xbf16>, vector<128x128xbf16>, vector<128x128xf32> -> vector<128x128xf32>
    %11 = vector.shape_cast %10 : vector<128x128xf32> to vector<1x128x128xf32>
    %cst_8 = arith.constant dense<0x7F800000> : vector<1xf32>
    %12 = vector.multi_reduction <minimumf>, %11, %cst_8 [1, 2] : vector<1x128x128xf32> to vector<1xf32>
    %13 = vector.shape_cast %12 : vector<1xf32> to vector<1x1x1xf32>
    %14 = vector.extract %13[0, 0, 0] : f32 from vector<1x1x1xf32>
    %15 = vector.shape_cast %10 : vector<128x128xf32> to vector<1x128x128xf32>
    %cst_9 = arith.constant dense<0xFF800000> : vector<1xf32>
    %16 = vector.multi_reduction <maximumf>, %15, %cst_9 [1, 2] : vector<1x128x128xf32> to vector<1xf32>
    %17 = vector.shape_cast %16 : vector<1xf32> to vector<1x1x1xf32>
    %18 = vector.extract %17[0, 0, 0] : f32 from vector<1x1x1xf32>
    %19 = vector.broadcast %14 : f32 to vector<128x128xf32>
    %20 = arith.subf %10, %19 : vector<128x128xf32>
    %21 = arith.subf %18, %14 : f32
    %cst_10 = arith.constant 1.000000e+00 : f32
    %22 = arith.divf %cst_10, %21 : f32
    %23 = vector.broadcast %22 : f32 to vector<128x128xf32>
    %24 = arith.mulf %20, %23 : vector<128x128xf32>
    %c0_11 = arith.constant 0 : index
    %c0_12 = arith.constant 0 : index
    %25 = vector.load %arg4[%c0_11, %c0_12] : memref<128x128xf32, #tpu.memory_space<vmem>>, vector<128x128xf32>
    tpu.vector_store %arg4[%c0_11, %c0_12], %24 {strides = array<i32>} : memref<128x128xf32, #tpu.memory_space<vmem>>, vector<128x128xf32>,
    return
  }
}

module attributes {stable_mosaic.version = 11 : i64} {
  func.func @dog_kernel(%arg0: i32, %arg1: i32, %arg2: memref<1x128x128xf32, #tpu.memory_space<vmem>>, %arg3: memref<1x128x128xbf16, #tpu.memory_space<vmem>>, %arg4: memref<256x256xbf16, #tpu.memory_space<vmem>>, %arg5: memref<1x64x128xf32, #tpu.memory_space<vmem>>) attributes {dimension_semantics = [#tpu.dimension_semantics<parallel>, #tpu.dimension_semantics<parallel>], iteration_bounds = array<i64: 3, 2>, scalar_prefetch = 0 : i64, scratch_operands = 0 : i64, tpu.core_type = #tpu.core_type<tc>, window_params = [{transform_indices = @transform_0, window_bounds = array<i64: 1, 128, 128>}, {transform_indices = @transform_1, window_bounds = array<i64: 1, 128, 128>}, {pipeline_mode = #tpu.pipeline_mode<synchronous>, transform_indices = @transform_2, window_bounds = array<i64: 256, 256>}, {transform_indices = @transform_3, window_bounds = array<i64: 1, 64, 128>}]} {
    %c0 = arith.constant 0 : index
    %c0_0 = arith.constant 0 : index
    %c0_1 = arith.constant 0 : index
    %0 = vector.load %arg2[%c0, %c0_0, %c0_1] : memref<1x128x128xf32, #tpu.memory_space<vmem>>, vector<1x128x128xf32>
    %1 = vector.shape_cast %0 : vector<1x128x128xf32> to vector<128x128xf32>
    %2 = arith.truncf %1 : vector<128x128xf32> to vector<128x128xbf16>
    %c0_2 = arith.constant 0 : index
    %c0_3 = arith.constant 0 : index
    %c0_4 = arith.constant 0 : index
    %3 = vector.load %arg3[%c0_2, %c0_3, %c0_4] : memref<1x128x128xbf16, #tpu.memory_space<vmem>>, vector<1x128x128xbf16>
    %4 = vector.shape_cast %3 : vector<1x128x128xbf16> to vector<128x128xbf16>
    %cst = arith.constant dense<0.000000e+00> : vector<128x128xf32>
    %5 = tpu.matmul %4, %2, %cst {dimension_numbers = #tpu.dot_dimension_numbers<[1], [0], [0], [1], [0, 0, 1, 1], [], []>} : vector<128x128xbf16>, vector<128x128xbf16>, vector<128x128xf32> -> vector<128x128xf32>
    %6 = arith.truncf %5 : vector<128x128xf32> to vector<128x128xbf16>
    %7 = vector.extract_strided_slice %6 {offsets = [0, 0], sizes = [64, 128], strides = [1, 1]} : vector<128x128xbf16> to vector<64x128xbf16>
    %8 = vector.extract_strided_slice %6 {offsets = [64, 0], sizes = [64, 128], strides = [1, 1]} : vector<128x128xbf16> to vector<64x128xbf16>
    %9 = tpu.concatenate %7, %8 in 1 : vector<64x128xbf16>, vector<64x128xbf16> -> vector<64x256xbf16>
    %c0_5 = arith.constant 0 : index
    %c0_6 = arith.constant 0 : index
    %10 = vector.load %arg4[%c0_5, %c0_6] : memref<256x256xbf16, #tpu.memory_space<vmem>>, vector<256x256xbf16>
    %cst_7 = arith.constant dense<0.000000e+00> : vector<64x256xf32>
    %11 = tpu.matmul %9, %10, %cst_7 {dimension_numbers = #tpu.dot_dimension_numbers<[1], [0], [0], [1], [0, 0, 1, 1], [], []>} : vector<64x256xbf16>, vector<256x256xbf16>, vector<64x256xf32> -> vector<64x256xf32>
    %12 = vector.extract_strided_slice %11 {offsets = [0, 0], sizes = [64, 128], strides = [1, 1]} : vector<64x256xf32> to vector<64x128xf32>
    %13 = vector.extract_strided_slice %11 {offsets = [0, 128], sizes = [64, 128], strides = [1, 1]} : vector<64x256xf32> to vector<64x128xf32>
    %14 = tpu.reciprocal %12 : vector<64x128xf32> -> vector<64x128xf32>
    %15 = arith.mulf %13, %14 : vector<64x128xf32>
    %cst_8 = arith.constant 1.000000e+00 : f32
    %16 = vector.broadcast %cst_8 : f32 to vector<64x128xf32>
    %17 = arith.subf %16, %15 : vector<64x128xf32>
    %c0_9 = arith.constant 0 : index
    %c0_10 = arith.constant 0 : index
    %c0_11 = arith.constant 0 : index
    %18 = vector.load %arg5[%c0_9, %c0_10, %c0_11] : memref<1x64x128xf32, #tpu.memory_space<vmem>>, vector<1x64x128xf32>
    %19 = vector.shape_cast %18 : vector<1x64x128xf32> to vector<64x128xf32>
    %20 = vector.shape_cast %17 : vector<64x128xf32> to vector<1x64x128xf32>
    tpu.vector_store %arg5[%c0_9, %c0_10, %c0_11], %20 {strides = array<i32>} : memref<1x64x128xf32, #tpu.memory_space<vmem>>, vector<1x64x128xf32>,
    return
  }
  func.func @transform_0(%arg0: i32, %arg1: i32) -> (i32, i32, i32) {
    %c0_i32 = arith.constant 0 : i32
    %c0_i32_0 = arith.constant 0 : i32
    %c0_i32_1 = arith.constant 0 : i32
    return %arg0, %c0_i32, %c0_i32_0 : i32, i32, i32
  }
  func.func @transform_1(%arg0: i32, %arg1: i32) -> (i32, i32, i32) {
    %c0_i32 = arith.constant 0 : i32
    %c0_i32_0 = arith.constant 0 : i32
    %c0_i32_1 = arith.constant 0 : i32
    return %arg1, %c0_i32, %c0_i32_0 : i32, i32, i32
  }
  func.func @transform_2(%arg0: i32, %arg1: i32) -> (i32, i32) {
    %c0_i32 = arith.constant 0 : i32
    %c0_i32_0 = arith.constant 0 : i32
    %c0_i32_1 = arith.constant 0 : i32
    return %c0_i32, %c0_i32_0 : i32, i32
  }
  func.func @transform_3(%arg0: i32, %arg1: i32) -> (i32, i32, i32) {
    %c0_i32 = arith.constant 0 : i32
    %c0_i32_0 = arith.constant 0 : i32
    return %arg0, %arg1, %c0_i32 : i32, i32, i32
  }
}

</mosaic_0001>

<llo_original>
// kernel: cal_contrast_forward.4
$region0: #{cal_contrast_forward.4}
  #allocation0 [shape = 'u32[]', space=smem, size = 0x4, offset = 0x4, fixed_abs, tag = 'smem constant byte address 0x4 - core index']
  #allocation1 [shape = 'u32[72,128]{1,0:T(1,128)}', space=vmem, size = 0x9000, scoped, tag = 'internal scratch']
  %s0 = inlined_call_operand.vmem [shape: f32[128,128], index: 0, kind: input, shape index: {}]
  %s1 = inlined_call_operand.vmem [shape: f32[128,128], index: 1, kind: input, shape index: {}]
  %s2 = inlined_call_operand.vmem [shape: bf16[128,128], index: 2, kind: input, shape index: {}]
  %s3 = inlined_call_operand.vmem [shape: bf16[128,128], index: 3, kind: input, shape index: {}]
  %s4 = inlined_call_operand.vmem [shape: f32[128,128], index: 4, kind: output, shape index: {0}]
  %s5 = inlined_call_operand.vmem [shape: f32[128,128], index: 5, kind: output, shape index: {1}]
  %6 = xla_tuple %s4, %s5
  %s7 = sld [smem:[#allocation0]]
  $region34: #{cal_contrast_forward.4} parent=0
    _
  %s9 = ssub.s32 1, %s7
  %s10 = scalar_select 0, %s9, %s7
  // Predicated region
  $region2: #{cal_contrast_forward.4} parent=0 // pred_check
    _
  $region3: #{cal_contrast_forward.4} parent=0 // pred_check_branch
    %12 = sbr.rel (0) target = $region5
  $region4: #{cal_contrast_forward.4} parent=0 // pred_region
    _
  $region5: #{cal_contrast_forward.4} parent=0 // pred_fallthru
    _
  // Predicated region
  $region6: #{cal_contrast_forward.4} parent=0 // pred_check
    _
  $region7: #{cal_contrast_forward.4} parent=0 // pred_check_branch
    %14 = sbr.rel (0) target = $region9
  $region8: #{cal_contrast_forward.4} parent=0 // pred_region
    _
  $region9: #{cal_contrast_forward.4} parent=0 // pred_fallthru
    _
  // Predicated region
  $region10: #{cal_contrast_forward.4} parent=0 // pred_check
    _
  $region11: #{cal_contrast_forward.4} parent=0 // pred_check_branch
    %16 = sbr.rel (0) target = $region13
  $region12: #{cal_contrast_forward.4} parent=0 // pred_region
    _
  $region13: #{cal_contrast_forward.4} parent=0 // pred_fallthru
    _
  // Predicated region
  $region14: #{cal_contrast_forward.4} parent=0 // pred_check
    _
  $region15: #{cal_contrast_forward.4} parent=0 // pred_check_branch
    %18 = sbr.rel (0) target = $region17
  $region16: #{cal_contrast_forward.4} parent=0 // pred_region
    _
  $region17: #{cal_contrast_forward.4} parent=0 // pred_fallthru
    _
  %v19 = vld [vmem:[%s0] sm:$0xff]
  %v20 = vld [vmem:[%s0 + $0x8] sm:$0xff]
  %v21 = vld [vmem:[%s0 + $0x10] sm:$0xff]
  %v22 = vld [vmem:[%s0 + $0x18] sm:$0xff]
  %v23 = vld [vmem:[%s0 + $0x20] sm:$0xff]
  %v24 = vld [vmem:[%s0 + $0x28] sm:$0xff]
  %v25 = vld [vmem:[%s0 + $0x30] sm:$0xff]
  %v26 = vld [vmem:[%s0 + $0x38] sm:$0xff]
  %v27 = vld [vmem:[%s0 + $0x40] sm:$0xff]
  %v28 = vld [vmem:[%s0 + $0x48] sm:$0xff]
  %v29 = vld [vmem:[%s0 + $0x50] sm:$0xff]
  %v30 = vld [vmem:[%s0 + $0x58] sm:$0xff]
  %v31 = vld [vmem:[%s0 + $0x60] sm:$0xff]
  %v32 = vld [vmem:[%s0 + $0x68] sm:$0xff]
  %v33 = vld [vmem:[%s0 + $0x70] sm:$0xff]
  %v34 = vld [vmem:[%s0 + $0x78] sm:$0xff]
  %v35 = vld [vmem:[%s1] sm:$0xff]
  %v36 = vld [vmem:[%s1 + $0x8] sm:$0xff]
  %v37 = vld [vmem:[%s1 + $0x10] sm:$0xff]
  %v38 = vld [vmem:[%s1 + $0x18] sm:$0xff]
  %v39 = vld [vmem:[%s1 + $0x20] sm:$0xff]
  %v40 = vld [vmem:[%s1 + $0x28] sm:$0xff]
  %v41 = vld [vmem:[%s1 + $0x30] sm:$0xff]
  %v42 = vld [vmem:[%s1 + $0x38] sm:$0xff]
  %v43 = vld [vmem:[%s1 + $0x40] sm:$0xff]
  %v44 = vld [vmem:[%s1 + $0x48] sm:$0xff]
  %v45 = vld [vmem:[%s1 + $0x50] sm:$0xff]
  %v46 = vld [vmem:[%s1 + $0x58] sm:$0xff]
  %v47 = vld [vmem:[%s1 + $0x60] sm:$0xff]
  %v48 = vld [vmem:[%s1 + $0x68] sm:$0xff]
  %v49 = vld [vmem:[%s1 + $0x70] sm:$0xff]
  %v50 = vld [vmem:[%s1 + $0x78] sm:$0xff]
  %v51 = vmul.f32 %v19, %v19
  %v52 = vmul.f32 %v20, %v20
  %v53 = vmul.f32 %v21, %v21
  %v54 = vmul.f32 %v22, %v22
  %v55 = vmul.f32 %v23, %v23
  %v56 = vmul.f32 %v24, %v24
  %v57 = vmul.f32 %v25, %v25
  %v58 = vmul.f32 %v26, %v26
  %v59 = vmul.f32 %v27, %v27
  %v60 = vmul.f32 %v28, %v28
  %v61 = vmul.f32 %v29, %v29
  %v62 = vmul.f32 %v30, %v30
  %v63 = vmul.f32 %v31, %v31
  %v64 = vmul.f32 %v32, %v32
  %v65 = vmul.f32 %v33, %v33
  %v66 = vmul.f32 %v34, %v34
  %v67 = vmul.f32 %v35, %v35
  %v68 = vmul.f32 %v36, %v36
  %v69 = vmul.f32 %v37, %v37
  %v70 = vmul.f32 %v38, %v38
  %v71 = vmul.f32 %v39, %v39
  %v72 = vmul.f32 %v40, %v40
  %v73 = vmul.f32 %v41, %v41
  %v74 = vmul.f32 %v42, %v42
  %v75 = vmul.f32 %v43, %v43
  %v76 = vmul.f32 %v44, %v44
  %v77 = vmul.f32 %v45, %v45
  %v78 = vmul.f32 %v46, %v46
  %v79 = vmul.f32 %v47, %v47
  %v80 = vmul.f32 %v48, %v48
  %v81 = vmul.f32 %v49, %v49
  %v82 = vmul.f32 %v50, %v50
  %v83 = vadd.f32 %v51, %v67
  %v84 = vadd.f32 %v52, %v68
  %v85 = vadd.f32 %v53, %v69
  %v86 = vadd.f32 %v54, %v70
  %v87 = vadd.f32 %v55, %v71
  %v88 = vadd.f32 %v56, %v72
  %v89 = vadd.f32 %v57, %v73
  %v90 = vadd.f32 %v58, %v74
  %v91 = vadd.f32 %v59, %v75
  %v92 = vadd.f32 %v60, %v76
  %v93 = vadd.f32 %v61, %v77
  %v94 = vadd.f32 %v62, %v78
  %v95 = vadd.f32 %v63, %v79
  %v96 = vadd.f32 %v64, %v80
  %v97 = vadd.f32 %v65, %v81
  %v98 = vadd.f32 %v66, %v82
  %v99 = vlog2.pop %v83
  %v100 = vmul.f32 %v99, 0.6931472
  %v101 = vlog2.pop %v84
  %v102 = vmul.f32 %v101, 0.6931472
  %v103 = vlog2.pop %v85
  %v104 = vmul.f32 %v103, 0.6931472
  %v105 = vlog2.pop %v86
  %v106 = vmul.f32 %v105, 0.6931472
  %v107 = vlog2.pop %v87
  %v108 = vmul.f32 %v107, 0.6931472
  %v109 = vlog2.pop %v88
  %v110 = vmul.f32 %v109, 0.6931472
  %v111 = vlog2.pop %v89
  %v112 = vmul.f32 %v111, 0.6931472
  %v113 = vlog2.pop %v90
  %v114 = vmul.f32 %v113, 0.6931472
  %v115 = vlog2.pop %v91
  %v116 = vmul.f32 %v115, 0.6931472
  %v117 = vlog2.pop %v92
  %v118 = vmul.f32 %v117, 0.6931472
  %v119 = vlog2.pop %v93
  %v120 = vmul.f32 %v119, 0.6931472
  %v121 = vlog2.pop %v94
  %v122 = vmul.f32 %v121, 0.6931472
  %v123 = vlog2.pop %v95
  %v124 = vmul.f32 %v123, 0.6931472
  %v125 = vlog2.pop %v96
  %v126 = vmul.f32 %v125, 0.6931472
  %v127 = vlog2.pop %v97
  %v128 = vmul.f32 %v127, 0.6931472
  %v129 = vlog2.pop %v98
  %v130 = vmul.f32 %v129, 0.6931472
  %v131 = vmul.f32 %v100, 0.5
  %v132 = vmul.f32 %v102, 0.5
  %v133 = vmul.f32 %v104, 0.5
  %v134 = vmul.f32 %v106, 0.5
  %v135 = vmul.f32 %v108, 0.5
  %v136 = vmul.f32 %v110, 0.5
  %v137 = vmul.f32 %v112, 0.5
  %v138 = vmul.f32 %v114, 0.5
  %v139 = vmul.f32 %v116, 0.5
  %v140 = vmul.f32 %v118, 0.5
  %v141 = vmul.f32 %v120, 0.5
  %v142 = vmul.f32 %v122, 0.5
  %v143 = vmul.f32 %v124, 0.5
  %v144 = vmul.f32 %v126, 0.5
  %v145 = vmul.f32 %v128, 0.5
  %v146 = vmul.f32 %v130, 0.5
  %v147 = vld [vmem:[%s2] sm:$0xf]
  %v148 = vld [vmem:[%s2 + $0x4] sm:$0xf]
  %v149 = vld [vmem:[%s2 + $0x8] sm:$0xf]
  %v150 = vld [vmem:[%s2 + $0xc] sm:$0xf]
  %v151 = vld [vmem:[%s2 + $0x10] sm:$0xf]
  %v152 = vld [vmem:[%s2 + $0x14] sm:$0xf]
  %v153 = vld [vmem:[%s2 + $0x18] sm:$0xf]
  %v154 = vld [vmem:[%s2 + $0x1c] sm:$0xf]
  %v155 = vld [vmem:[%s2 + $0x20] sm:$0xf]
  %v156 = vld [vmem:[%s2 + $0x24] sm:$0xf]
  %v157 = vld [vmem:[%s2 + $0x28] sm:$0xf]
  %v158 = vld [vmem:[%s2 + $0x2c] sm:$0xf]
  %v159 = vld [vmem:[%s2 + $0x30] sm:$0xf]
  %v160 = vld [vmem:[%s2 + $0x34] sm:$0xf]
  %v161 = vld [vmem:[%s2 + $0x38] sm:$0xf]
  %v162 = vld [vmem:[%s2 + $0x3c] sm:$0xf]
  %v163 = vpack.c.bf16 %v132, %v131
  %v164 = vpack.c.bf16 %v134, %v133
  %v165 = vpack.c.bf16 %v136, %v135
  %v166 = vpack.c.bf16 %v138, %v137
  %v167 = vpack.c.bf16 %v140, %v139
  %v168 = vpack.c.bf16 %v142, %v141
  %v169 = vpack.c.bf16 %v144, %v143
  %v170 = vpack.c.bf16 %v146, %v145
  %v187 = vunpack.c.l.b16 %v147
  %v188 = vunpack.c.l.b16 %v148
  %v189 = vunpack.c.l.b16 %v149
  %v190 = vunpack.c.l.b16 %v150
  %v191 = vunpack.c.l.b16 %v151
  %v192 = vunpack.c.l.b16 %v152
  %v193 = vunpack.c.l.b16 %v153
  %v194 = vunpack.c.l.b16 %v154
  %v195 = vunpack.c.l.b16 %v155
  %v196 = vunpack.c.l.b16 %v156
  %v197 = vunpack.c.l.b16 %v157
  %v198 = vunpack.c.l.b16 %v158
  %v199 = vunpack.c.l.b16 %v159
  %v200 = vunpack.c.l.b16 %v160
  %v201 = vunpack.c.l.b16 %v161
  %v202 = vunpack.c.l.b16 %v162
  %v203 = vpack.c.b16 %v188, %v187
  %v204 = vpack.c.b16 %v190, %v189
  %v205 = vpack.c.b16 %v192, %v191
  %v206 = vpack.c.b16 %v194, %v193
  %v207 = vpack.c.b16 %v196, %v195
  %v208 = vpack.c.b16 %v198, %v197
  %v209 = vpack.c.b16 %v200, %v199
  %v210 = vpack.c.b16 %v202, %v201
  %219 = vmatpush.bf16.msra.mxu0 %v170
  %220 = vmatpush.bf16.msra.mxu0 %v169
  %221 = vmatpush.bf16.msra.mxu0 %v168
  %222 = vmatpush.bf16.msra.mxu0 %v167
  %223 = vmatpush.bf16.msra.mxu0 %v166
  %224 = vmatpush.bf16.msra.mxu0 %v165
  %225 = vmatpush.bf16.msra.mxu0 %v164
  %226 = vmatpush.bf16.msra.mxu0 %v163
  %227 = vmatmul.bf16.gmra.mxu0 %v203
  %v228 = vpop.f32.mrf.mxu0
  %v229 = vadd.f32 0.0, %v228
  %v230 = vpop.f32.mrf.mxu0
  %v231 = vadd.f32 0.0, %v230
  %232 = vmatmul.bf16.gmra.mxu0 %v204
  %v233 = vpop.f32.mrf.mxu0
  %v234 = vadd.f32 0.0, %v233
  %v235 = vpop.f32.mrf.mxu0
  %v236 = vadd.f32 0.0, %v235
  %237 = vmatmul.bf16.gmra.mxu0 %v205
  %v238 = vpop.f32.mrf.mxu0
  %v239 = vadd.f32 0.0, %v238
  %v240 = vpop.f32.mrf.mxu0
  %v241 = vadd.f32 0.0, %v240
  %242 = vmatmul.bf16.gmra.mxu0 %v206
  %v243 = vpop.f32.mrf.mxu0
  %v244 = vadd.f32 0.0, %v243
  %v245 = vpop.f32.mrf.mxu0
  %v246 = vadd.f32 0.0, %v245
  %247 = vmatmul.bf16.gmra.mxu0 %v207
  %v248 = vpop.f32.mrf.mxu0
  %v249 = vadd.f32 0.0, %v248
  %v250 = vpop.f32.mrf.mxu0
  %v251 = vadd.f32 0.0, %v250
  %252 = vmatmul.bf16.gmra.mxu0 %v208
  %v253 = vpop.f32.mrf.mxu0
  %v254 = vadd.f32 0.0, %v253
  %v255 = vpop.f32.mrf.mxu0
  %v256 = vadd.f32 0.0, %v255
  %257 = vmatmul.bf16.gmra.mxu0 %v209
  %v258 = vpop.f32.mrf.mxu0
  %v259 = vadd.f32 0.0, %v258
  %v260 = vpop.f32.mrf.mxu0
  %v261 = vadd.f32 0.0, %v260
  %262 = vmatmul.bf16.gmra.mxu0 %v210
  %v263 = vpop.f32.mrf.mxu0
  %v264 = vadd.f32 0.0, %v263
  %v265 = vpop.f32.mrf.mxu0
  %v266 = vadd.f32 0.0, %v265
  %267 = vdwg.mxu0
  %v268 = vpack.c.bf16 %v231, %v229
  %v269 = vpack.c.bf16 %v236, %v234
  %v270 = vpack.c.bf16 %v241, %v239
  %v271 = vpack.c.bf16 %v246, %v244
  %v272 = vpack.c.bf16 %v251, %v249
  %v273 = vpack.c.bf16 %v256, %v254
  %v274 = vpack.c.bf16 %v261, %v259
  %v275 = vpack.c.bf16 %v266, %v264
  %v276 = vld [vmem:[%s3] sm:$0xf]
  %v277 = vld [vmem:[%s3 + $0x4] sm:$0xf]
  %v278 = vld [vmem:[%s3 + $0x8] sm:$0xf]
  %v279 = vld [vmem:[%s3 + $0xc] sm:$0xf]
  %v280 = vld [vmem:[%s3 + $0x10] sm:$0xf]
  %v281 = vld [vmem:[%s3 + $0x14] sm:$0xf]
  %v282 = vld [vmem:[%s3 + $0x18] sm:$0xf]
  %v283 = vld [vmem:[%s3 + $0x1c] sm:$0xf]
  %v284 = vld [vmem:[%s3 + $0x20] sm:$0xf]
  %v285 = vld [vmem:[%s3 + $0x24] sm:$0xf]
  %v286 = vld [vmem:[%s3 + $0x28] sm:$0xf]
  %v287 = vld [vmem:[%s3 + $0x2c] sm:$0xf]
  %v288 = vld [vmem:[%s3 + $0x30] sm:$0xf]
  %v289 = vld [vmem:[%s3 + $0x34] sm:$0xf]
  %v290 = vld [vmem:[%s3 + $0x38] sm:$0xf]
  %v291 = vld [vmem:[%s3 + $0x3c] sm:$0xf]
  %v308 = vunpack.c.l.b16 %v276
  %v309 = vunpack.c.l.b16 %v277
  %v310 = vunpack.c.l.b16 %v278
  %v311 = vunpack.c.l.b16 %v279
  %v312 = vunpack.c.l.b16 %v280
  %v313 = vunpack.c.l.b16 %v281
  %v314 = vunpack.c.l.b16 %v282
  %v315 = vunpack.c.l.b16 %v283
  %v316 = vunpack.c.l.b16 %v284
  %v317 = vunpack.c.l.b16 %v285
  %v318 = vunpack.c.l.b16 %v286
  %v319 = vunpack.c.l.b16 %v287
  %v320 = vunpack.c.l.b16 %v288
  %v321 = vunpack.c.l.b16 %v289
  %v322 = vunpack.c.l.b16 %v290
  %v323 = vunpack.c.l.b16 %v291
  %v324 = vpack.c.b16 %v309, %v308
  %v325 = vpack.c.b16 %v311, %v310
  %v326 = vpack.c.b16 %v313, %v312
  %v327 = vpack.c.b16 %v315, %v314
  %v328 = vpack.c.b16 %v317, %v316
  %v329 = vpack.c.b16 %v319, %v318
  %v330 = vpack.c.b16 %v321, %v320
  %v331 = vpack.c.b16 %v323, %v322
  %340 = vmatpush.bf16.msra.mxu0 %v331
  %341 = vmatpush.bf16.msra.mxu0 %v330
  %342 = vmatpush.bf16.msra.mxu0 %v329
  %343 = vmatpush.bf16.msra.mxu0 %v328
  %344 = vmatpush.bf16.msra.mxu0 %v327
  %345 = vmatpush.bf16.msra.mxu0 %v326
  %346 = vmatpush.bf16.msra.mxu0 %v325
  %347 = vmatpush.bf16.msra.mxu0 %v324
  %348 = vmatmul.bf16.gmra.mxu0 %v268
  %v349 = vpop.f32.mrf.mxu0
  %v350 = vadd.f32 0.0, %v349
  %v351 = vpop.f32.mrf.mxu0
  %v352 = vadd.f32 0.0, %v351
  %353 = vmatmul.bf16.gmra.mxu0 %v269
  %v354 = vpop.f32.mrf.mxu0
  %v355 = vadd.f32 0.0, %v354
  %v356 = vpop.f32.mrf.mxu0
  %v357 = vadd.f32 0.0, %v356
  %358 = vmatmul.bf16.gmra.mxu0 %v270
  %v359 = vpop.f32.mrf.mxu0
  %v360 = vadd.f32 0.0, %v359
  %v361 = vpop.f32.mrf.mxu0
  %v362 = vadd.f32 0.0, %v361
  %363 = vmatmul.bf16.gmra.mxu0 %v271
  %v364 = vpop.f32.mrf.mxu0
  %v365 = vadd.f32 0.0, %v364
  %v366 = vpop.f32.mrf.mxu0
  %v367 = vadd.f32 0.0, %v366
  %368 = vmatmul.bf16.gmra.mxu0 %v272
  %v369 = vpop.f32.mrf.mxu0
  %v370 = vadd.f32 0.0, %v369
  %v371 = vpop.f32.mrf.mxu0
  %v372 = vadd.f32 0.0, %v371
  %373 = vmatmul.bf16.gmra.mxu0 %v273
  %v374 = vpop.f32.mrf.mxu0
  %v375 = vadd.f32 0.0, %v374
  %v376 = vpop.f32.mrf.mxu0
  %v377 = vadd.f32 0.0, %v376
  %378 = vmatmul.bf16.gmra.mxu0 %v274
  %v379 = vpop.f32.mrf.mxu0
  %v380 = vadd.f32 0.0, %v379
  %v381 = vpop.f32.mrf.mxu0
  %v382 = vadd.f32 0.0, %v381
  %383 = vmatmul.bf16.gmra.mxu0 %v275
  %v384 = vpop.f32.mrf.mxu0
  %v385 = vadd.f32 0.0, %v384
  %v386 = vpop.f32.mrf.mxu0
  %v387 = vadd.f32 0.0, %v386
  %388 = vdwg.mxu0
  %v389 = vmax.f32 %v350, 0.0
  %v390 = vmax.f32 %v352, 0.0
  %v391 = vmax.f32 %v355, 0.0
  %v392 = vmax.f32 %v357, 0.0
  %v393 = vmax.f32 %v360, 0.0
  %v394 = vmax.f32 %v362, 0.0
  %v395 = vmax.f32 %v365, 0.0
  %v396 = vmax.f32 %v367, 0.0
  %v397 = vmax.f32 %v370, 0.0
  %v398 = vmax.f32 %v372, 0.0
  %v399 = vmax.f32 %v375, 0.0
  %v400 = vmax.f32 %v377, 0.0
  %v401 = vmax.f32 %v380, 0.0
  %v402 = vmax.f32 %v382, 0.0
  %v403 = vmax.f32 %v385, 0.0
  %v404 = vmax.f32 %v387, 0.0
  %v405 = vmin.f32 %v389, 255.0
  %v406 = vmin.f32 %v390, 255.0
  %v407 = vmin.f32 %v391, 255.0
  %v408 = vmin.f32 %v392, 255.0
  %v409 = vmin.f32 %v393, 255.0
  %v410 = vmin.f32 %v394, 255.0
  %v411 = vmin.f32 %v395, 255.0
  %v412 = vmin.f32 %v396, 255.0
  %v413 = vmin.f32 %v397, 255.0
  %v414 = vmin.f32 %v398, 255.0
  %v415 = vmin.f32 %v399, 255.0
  %v416 = vmin.f32 %v400, 255.0
  %v417 = vmin.f32 %v401, 255.0
  %v418 = vmin.f32 %v402, 255.0
  %v419 = vmin.f32 %v403, 255.0
  %v420 = vmin.f32 %v404, 255.0
  %v421 = vsub.f32 %v131, %v405
  %v422 = vsub.f32 %v132, %v406
  %v423 = vsub.f32 %v133, %v407
  %v424 = vsub.f32 %v134, %v408
  %v425 = vsub.f32 %v135, %v409
  %v426 = vsub.f32 %v136, %v410
  %v427 = vsub.f32 %v137, %v411
  %v428 = vsub.f32 %v138, %v412
  %v429 = vsub.f32 %v139, %v413
  %v430 = vsub.f32 %v140, %v414
  %v431 = vsub.f32 %v141, %v415
  %v432 = vsub.f32 %v142, %v416
  %v433 = vsub.f32 %v143, %v417
  %v434 = vsub.f32 %v144, %v418
  %v435 = vsub.f32 %v145, %v419
  %v436 = vsub.f32 %v146, %v420
  %v437 = vmul.f32 %v421, 1.442695
  %v438 = vpow.pop %v437
  %v439 = vmul.f32 %v422, 1.442695
  %v440 = vpow.pop %v439
  %v441 = vmul.f32 %v423, 1.442695
  %v442 = vpow.pop %v441
  %v443 = vmul.f32 %v424, 1.442695
  %v444 = vpow.pop %v443
  %v445 = vmul.f32 %v425, 1.442695
  %v446 = vpow.pop %v445
  %v447 = vmul.f32 %v426, 1.442695
  %v448 = vpow.pop %v447
  %v449 = vmul.f32 %v427, 1.442695
  %v450 = vpow.pop %v449
  %v451 = vmul.f32 %v428, 1.442695
  %v452 = vpow.pop %v451
  %v453 = vmul.f32 %v429, 1.442695
  %v454 = vpow.pop %v453
  %v455 = vmul.f32 %v430, 1.442695
  %v456 = vpow.pop %v455
  %v457 = vmul.f32 %v431, 1.442695
  %v458 = vpow.pop %v457
  %v459 = vmul.f32 %v432, 1.442695
  %v460 = vpow.pop %v459
  %v461 = vmul.f32 %v433, 1.442695
  %v462 = vpow.pop %v461
  %v463 = vmul.f32 %v434, 1.442695
  %v464 = vpow.pop %v463
  %v465 = vmul.f32 %v435, 1.442695
  %v466 = vpow.pop %v465
  %v467 = vmul.f32 %v436, 1.442695
  %v468 = vpow.pop %v467
  %v469 = vrsqrt.pop %v83
  %v470 = vmul.f32 %v469, %v83
  %v471 = vmul.f32 %v470, %v469
  %v472 = vmul.f32 0.5, %v471
  %v473 = vsub.f32 1.5, %v472
  %v474 = vmul.f32 %v469, %v473
  %vm475 = vweird.f32 %v83
  %vm476 = vweird.f32 %v469
  %vm477 = vmor %vm475, %vm476
  %v478 = vsel %vm477, %v469, %v474
  %v479 = vrsqrt.pop %v84
  %v480 = vmul.f32 %v479, %v84
  %v481 = vmul.f32 %v480, %v479
  %v482 = vmul.f32 0.5, %v481
  %v483 = vsub.f32 1.5, %v482
  %v484 = vmul.f32 %v479, %v483
  %vm485 = vweird.f32 %v84
  %vm486 = vweird.f32 %v479
  %vm487 = vmor %vm485, %vm486
  %v488 = vsel %vm487, %v479, %v484
  %v489 = vrsqrt.pop %v85
  %v490 = vmul.f32 %v489, %v85
  %v491 = vmul.f32 %v490, %v489
  %v492 = vmul.f32 0.5, %v491
  %v493 = vsub.f32 1.5, %v492
  %v494 = vmul.f32 %v489, %v493
  %vm495 = vweird.f32 %v85
  %vm496 = vweird.f32 %v489
  %vm497 = vmor %vm495, %vm496
  %v498 = vsel %vm497, %v489, %v494
  %v499 = vrsqrt.pop %v86
  %v500 = vmul.f32 %v499, %v86
  %v501 = vmul.f32 %v500, %v499
  %v502 = vmul.f32 0.5, %v501
  %v503 = vsub.f32 1.5, %v502
  %v504 = vmul.f32 %v499, %v503
  %vm505 = vweird.f32 %v86
  %vm506 = vweird.f32 %v499
  %vm507 = vmor %vm505, %vm506
  %v508 = vsel %vm507, %v499, %v504
  %v509 = vrsqrt.pop %v87
  %v510 = vmul.f32 %v509, %v87
  %v511 = vmul.f32 %v510, %v509
  %v512 = vmul.f32 0.5, %v511
  %v513 = vsub.f32 1.5, %v512
  %v514 = vmul.f32 %v509, %v513
  %vm515 = vweird.f32 %v87
  %vm516 = vweird.f32 %v509
  %vm517 = vmor %vm515, %vm516
  %v518 = vsel %vm517, %v509, %v514
  %v519 = vrsqrt.pop %v88
  %v520 = vmul.f32 %v519, %v88
  %v521 = vmul.f32 %v520, %v519
  %v522 = vmul.f32 0.5, %v521
  %v523 = vsub.f32 1.5, %v522
  %v524 = vmul.f32 %v519, %v523
  %vm525 = vweird.f32 %v88
  %vm526 = vweird.f32 %v519
  %vm527 = vmor %vm525, %vm526
  %v528 = vsel %vm527, %v519, %v524
  %v529 = vrsqrt.pop %v89
  %v530 = vmul.f32 %v529, %v89
  %v531 = vmul.f32 %v530, %v529
  %v532 = vmul.f32 0.5, %v531
  %v533 = vsub.f32 1.5, %v532
  %v534 = vmul.f32 %v529, %v533
  %vm535 = vweird.f32 %v89
  %vm536 = vweird.f32 %v529
  %vm537 = vmor %vm535, %vm536
  %v538 = vsel %vm537, %v529, %v534
  %v539 = vrsqrt.pop %v90
  %v540 = vmul.f32 %v539, %v90
  %v541 = vmul.f32 %v540, %v539
  %v542 = vmul.f32 0.5, %v541
  %v543 = vsub.f32 1.5, %v542
  %v544 = vmul.f32 %v539, %v543
  %vm545 = vweird.f32 %v90
  %vm546 = vweird.f32 %v539
  %vm547 = vmor %vm545, %vm546
  %v548 = vsel %vm547, %v539, %v544
  %v549 = vrsqrt.pop %v91
  %v550 = vmul.f32 %v549, %v91
  %v551 = vmul.f32 %v550, %v549
  %v552 = vmul.f32 0.5, %v551
  %v553 = vsub.f32 1.5, %v552
  %v554 = vmul.f32 %v549, %v553
  %vm555 = vweird.f32 %v91
  %vm556 = vweird.f32 %v549
  %vm557 = vmor %vm555, %vm556
  %v558 = vsel %vm557, %v549, %v554
  %v559 = vrsqrt.pop %v92
  %v560 = vmul.f32 %v559, %v92
  %v561 = vmul.f32 %v560, %v559
  %v562 = vmul.f32 0.5, %v561
  %v563 = vsub.f32 1.5, %v562
  %v564 = vmul.f32 %v559, %v563
  %vm565 = vweird.f32 %v92
  %vm566 = vweird.f32 %v559
  %vm567 = vmor %vm565, %vm566
  %v568 = vsel %vm567, %v559, %v564
  %v569 = vrsqrt.pop %v93
  %v570 = vmul.f32 %v569, %v93
  %v571 = vmul.f32 %v570, %v569
  %v572 = vmul.f32 0.5, %v571
  %v573 = vsub.f32 1.5, %v572
  %v574 = vmul.f32 %v569, %v573
  %vm575 = vweird.f32 %v93
  %vm576 = vweird.f32 %v569
  %vm577 = vmor %vm575, %vm576
  %v578 = vsel %vm577, %v569, %v574
  %v579 = vrsqrt.pop %v94
  %v580 = vmul.f32 %v579, %v94
  %v581 = vmul.f32 %v580, %v579
  %v582 = vmul.f32 0.5, %v581
  %v583 = vsub.f32 1.5, %v582
  %v584 = vmul.f32 %v579, %v583
  %vm585 = vweird.f32 %v94
  %vm586 = vweird.f32 %v579
  %vm587 = vmor %vm585, %vm586
  %v588 = vsel %vm587, %v579, %v584
  %v589 = vrsqrt.pop %v95
  %v590 = vmul.f32 %v589, %v95
  %v591 = vmul.f32 %v590, %v589
  %v592 = vmul.f32 0.5, %v591
  %v593 = vsub.f32 1.5, %v592
  %v594 = vmul.f32 %v589, %v593
  %vm595 = vweird.f32 %v95
  %vm596 = vweird.f32 %v589
  %vm597 = vmor %vm595, %vm596
  %v598 = vsel %vm597, %v589, %v594
  %v599 = vrsqrt.pop %v96
  %v600 = vmul.f32 %v599, %v96
  %v601 = vmul.f32 %v600, %v599
  %v602 = vmul.f32 0.5, %v601
  %v603 = vsub.f32 1.5, %v602
  %v604 = vmul.f32 %v599, %v603
  %vm605 = vweird.f32 %v96
  %vm606 = vweird.f32 %v599
  %vm607 = vmor %vm605, %vm606
  %v608 = vsel %vm607, %v599, %v604
  %v609 = vrsqrt.pop %v97
  %v610 = vmul.f32 %v609, %v97
  %v611 = vmul.f32 %v610, %v609
  %v612 = vmul.f32 0.5, %v611
  %v613 = vsub.f32 1.5, %v612
  %v614 = vmul.f32 %v609, %v613
  %vm615 = vweird.f32 %v97
  %vm616 = vweird.f32 %v609
  %vm617 = vmor %vm615, %vm616
  %v618 = vsel %vm617, %v609, %v614
  %v619 = vrsqrt.pop %v98
  %v620 = vmul.f32 %v619, %v98
  %v621 = vmul.f32 %v620, %v619
  %v622 = vmul.f32 0.5, %v621
  %v623 = vsub.f32 1.5, %v622
  %v624 = vmul.f32 %v619, %v623
  %vm625 = vweird.f32 %v98
  %vm626 = vweird.f32 %v619
  %vm627 = vmor %vm625, %vm626
  %v628 = vsel %vm627, %v619, %v624
  %v629 = vmul.f32 %v438, %v478
  %v630 = vmul.f32 %v440, %v488
  %v631 = vmul.f32 %v442, %v498
  %v632 = vmul.f32 %v444, %v508
  %v633 = vmul.f32 %v446, %v518
  %v634 = vmul.f32 %v448, %v528
  %v635 = vmul.f32 %v450, %v538
  %v636 = vmul.f32 %v452, %v548
  %v637 = vmul.f32 %v454, %v558
  %v638 = vmul.f32 %v456, %v568
  %v639 = vmul.f32 %v458, %v578
  %v640 = vmul.f32 %v460, %v588
  %v641 = vmul.f32 %v462, %v598
  %v642 = vmul.f32 %v464, %v608
  %v643 = vmul.f32 %v466, %v618
  %v644 = vmul.f32 %v468, %v628
  %v645 = vmul.f32 %v19, %v629
  %v646 = vmul.f32 %v20, %v630
  %v647 = vmul.f32 %v21, %v631
  %v648 = vmul.f32 %v22, %v632
  %v649 = vmul.f32 %v23, %v633
  %v650 = vmul.f32 %v24, %v634
  %v651 = vmul.f32 %v25, %v635
  %v652 = vmul.f32 %v26, %v636
  %v653 = vmul.f32 %v27, %v637
  %v654 = vmul.f32 %v28, %v638
  %v655 = vmul.f32 %v29, %v639
  %v656 = vmul.f32 %v30, %v640
  %v657 = vmul.f32 %v31, %v641
  %v658 = vmul.f32 %v32, %v642
  %v659 = vmul.f32 %v33, %v643
  %v660 = vmul.f32 %v34, %v644
  %661 = vst [vmem:[%s4] sm:$0xff] %v645
  %662 = vst [vmem:[%s4 + $0x8] sm:$0xff] %v646
  %663 = vst [vmem:[%s4 + $0x10] sm:$0xff] %v647
  %664 = vst [vmem:[%s4 + $0x18] sm:$0xff] %v648
  %665 = vst [vmem:[%s4 + $0x20] sm:$0xff] %v649
  %666 = vst [vmem:[%s4 + $0x28] sm:$0xff] %v650
  %667 = vst [vmem:[%s4 + $0x30] sm:$0xff] %v651
  %668 = vst [vmem:[%s4 + $0x38] sm:$0xff] %v652
  %669 = vst [vmem:[%s4 + $0x40] sm:$0xff] %v653
  %670 = vst [vmem:[%s4 + $0x48] sm:$0xff] %v654
  %671 = vst [vmem:[%s4 + $0x50] sm:$0xff] %v655
  %672 = vst [vmem:[%s4 + $0x58] sm:$0xff] %v656
  %673 = vst [vmem:[%s4 + $0x60] sm:$0xff] %v657
  %674 = vst [vmem:[%s4 + $0x68] sm:$0xff] %v658
  %675 = vst [vmem:[%s4 + $0x70] sm:$0xff] %v659
  %676 = vst [vmem:[%s4 + $0x78] sm:$0xff] %v660
  %v677 = vmul.f32 %v35, %v629
  %v678 = vmul.f32 %v36, %v630
  %v679 = vmul.f32 %v37, %v631
  %v680 = vmul.f32 %v38, %v632
  %v681 = vmul.f32 %v39, %v633
  %v682 = vmul.f32 %v40, %v634
  %v683 = vmul.f32 %v41, %v635
  %v684 = vmul.f32 %v42, %v636
  %v685 = vmul.f32 %v43, %v637
  %v686 = vmul.f32 %v44, %v638
  %v687 = vmul.f32 %v45, %v639
  %v688 = vmul.f32 %v46, %v640
  %v689 = vmul.f32 %v47, %v641
  %v690 = vmul.f32 %v48, %v642
  %v691 = vmul.f32 %v49, %v643
  %v692 = vmul.f32 %v50, %v644
  %693 = vst [vmem:[%s5] sm:$0xff] %v677
  %694 = vst [vmem:[%s5 + $0x8] sm:$0xff] %v678
  %695 = vst [vmem:[%s5 + $0x10] sm:$0xff] %v679
  %696 = vst [vmem:[%s5 + $0x18] sm:$0xff] %v680
  %697 = vst [vmem:[%s5 + $0x20] sm:$0xff] %v681
  %698 = vst [vmem:[%s5 + $0x28] sm:$0xff] %v682
  %699 = vst [vmem:[%s5 + $0x30] sm:$0xff] %v683
  %700 = vst [vmem:[%s5 + $0x38] sm:$0xff] %v684
  %701 = vst [vmem:[%s5 + $0x40] sm:$0xff] %v685
  %702 = vst [vmem:[%s5 + $0x48] sm:$0xff] %v686
  %703 = vst [vmem:[%s5 + $0x50] sm:$0xff] %v687
  %704 = vst [vmem:[%s5 + $0x58] sm:$0xff] %v688
  %705 = vst [vmem:[%s5 + $0x60] sm:$0xff] %v689
  %706 = vst [vmem:[%s5 + $0x68] sm:$0xff] %v690
  %707 = vst [vmem:[%s5 + $0x70] sm:$0xff] %v691
  %708 = vst [vmem:[%s5 + $0x78] sm:$0xff] %v692
  // Predicated region
  $region18: #{cal_contrast_forward.4} parent=0 // pred_check
    _
  $region19: #{cal_contrast_forward.4} parent=0 // pred_check_branch
    %710 = sbr.rel (0) target = $region21
  $region20: #{cal_contrast_forward.4} parent=0 // pred_region
    _
  $region21: #{cal_contrast_forward.4} parent=0 // pred_fallthru
    _
  // Predicated region
  $region22: #{cal_contrast_forward.4} parent=0 // pred_check
    _
  $region23: #{cal_contrast_forward.4} parent=0 // pred_check_branch
    %712 = sbr.rel (0) target = $region25
  $region24: #{cal_contrast_forward.4} parent=0 // pred_region
    _
  $region25: #{cal_contrast_forward.4} parent=0 // pred_fallthru
    _
  // Predicated region
  $region26: #{cal_contrast_forward.4} parent=0 // pred_check
    _
  $region27: #{cal_contrast_forward.4} parent=0 // pred_check_branch
    %714 = sbr.rel (0) target = $region29
  $region28: #{cal_contrast_forward.4} parent=0 // pred_region
    _
  $region29: #{cal_contrast_forward.4} parent=0 // pred_fallthru
    _
  // Predicated region
  $region30: #{cal_contrast_forward.4} parent=0 // pred_check
    _
  $region31: #{cal_contrast_forward.4} parent=0 // pred_check_branch
    %716 = sbr.rel (0) target = $region33
  $region32: #{cal_contrast_forward.4} parent=0 // pred_region
    _
  $region33: #{cal_contrast_forward.4} parent=0 // pred_fallthru
    _

// kernel: cal_contrast_forward.5
$region0: #{cal_contrast_forward.5}
  #allocation0 [shape = 'u32[]', space=smem, size = 0x4, offset = 0x4, fixed_abs, tag = 'smem constant byte address 0x4 - core index']
  #allocation1 [shape = 'u32[72,128]{1,0:T(1,128)}', space=vmem, size = 0x9000, scoped, tag = 'internal scratch']
  %s0 = inlined_call_operand.vmem [shape: f32[128,128], index: 0, kind: input, shape index: {}]
  %s1 = inlined_call_operand.vmem [shape: f32[128,128], index: 1, kind: input, shape index: {}]
  %s2 = inlined_call_operand.vmem [shape: bf16[128,128], index: 2, kind: input, shape index: {}]
  %s3 = inlined_call_operand.vmem [shape: bf16[128,128], index: 3, kind: input, shape index: {}]
  %s4 = inlined_call_operand.hbm [shape: f32[128,128], index: 4, kind: output, shape index: {}]
  %s5 = sld [smem:[#allocation0]]
  $region26: #{cal_contrast_forward.5} parent=0
    _
  %s7 = ssub.s32 1, %s5
  %s8 = scalar_select 0, %s7, %s5
  $region1: #{cal_contrast_forward.5} parent=0
    #allocation2 [shape = 'u8[65536]{0}', space=vmem, size = 0x10000, scoped, tag = 'output window, operand 0, single buffered']
    #allocation3 [shape = 's32[1]{0}', space=sflag, size = 0x4, scoped, tag = 'scoped memory for cal_contrast_forward.5']
    %9 = vsyncpa [#allocation3], 0
    // Predicated region
    $region2: #{cal_contrast_forward.5} parent=1 // pred_check
      _
    $region3: #{cal_contrast_forward.5} parent=1 // pred_check_branch
      %11 = sbr.rel (0) target = $region5
    $region4: #{cal_contrast_forward.5} parent=1 // pred_region
      _
    $region5: #{cal_contrast_forward.5} parent=1 // pred_fallthru
      _
    // Predicated region
    $region6: #{cal_contrast_forward.5} parent=1 // pred_check
      _
    $region7: #{cal_contrast_forward.5} parent=1 // pred_check_branch
      %13 = sbr.rel (0) target = $region9
    $region8: #{cal_contrast_forward.5} parent=1 // pred_region
      _
    $region9: #{cal_contrast_forward.5} parent=1 // pred_fallthru
      _
    // Predicated region
    $region10: #{cal_contrast_forward.5} parent=1 // pred_check
      _
    $region11: #{cal_contrast_forward.5} parent=1 // pred_check_branch
      %15 = sbr.rel (0) target = $region13
    $region12: #{cal_contrast_forward.5} parent=1 // pred_region
      _
    $region13: #{cal_contrast_forward.5} parent=1 // pred_fallthru
      _
    // Predicated region
    $region14: #{cal_contrast_forward.5} parent=1 // pred_check
      _
    $region15: #{cal_contrast_forward.5} parent=1 // pred_check_branch
      %17 = sbr.rel (0) target = $region17
    $region16: #{cal_contrast_forward.5} parent=1 // pred_region
      _
    $region17: #{cal_contrast_forward.5} parent=1 // pred_fallthru
      _
    %v18 = vld [vmem:[%s0] sm:$0xff]
    %v19 = vld [vmem:[%s0 + $0x8] sm:$0xff]
    %v20 = vld [vmem:[%s0 + $0x10] sm:$0xff]
    %v21 = vld [vmem:[%s0 + $0x18] sm:$0xff]
    %v22 = vld [vmem:[%s0 + $0x20] sm:$0xff]
    %v23 = vld [vmem:[%s0 + $0x28] sm:$0xff]
    %v24 = vld [vmem:[%s0 + $0x30] sm:$0xff]
    %v25 = vld [vmem:[%s0 + $0x38] sm:$0xff]
    %v26 = vld [vmem:[%s0 + $0x40] sm:$0xff]
    %v27 = vld [vmem:[%s0 + $0x48] sm:$0xff]
    %v28 = vld [vmem:[%s0 + $0x50] sm:$0xff]
    %v29 = vld [vmem:[%s0 + $0x58] sm:$0xff]
    %v30 = vld [vmem:[%s0 + $0x60] sm:$0xff]
    %v31 = vld [vmem:[%s0 + $0x68] sm:$0xff]
    %v32 = vld [vmem:[%s0 + $0x70] sm:$0xff]
    %v33 = vld [vmem:[%s0 + $0x78] sm:$0xff]
    %v34 = vld [vmem:[%s1] sm:$0xff]
    %v35 = vld [vmem:[%s1 + $0x8] sm:$0xff]
    %v36 = vld [vmem:[%s1 + $0x10] sm:$0xff]
    %v37 = vld [vmem:[%s1 + $0x18] sm:$0xff]
    %v38 = vld [vmem:[%s1 + $0x20] sm:$0xff]
    %v39 = vld [vmem:[%s1 + $0x28] sm:$0xff]
    %v40 = vld [vmem:[%s1 + $0x30] sm:$0xff]
    %v41 = vld [vmem:[%s1 + $0x38] sm:$0xff]
    %v42 = vld [vmem:[%s1 + $0x40] sm:$0xff]
    %v43 = vld [vmem:[%s1 + $0x48] sm:$0xff]
    %v44 = vld [vmem:[%s1 + $0x50] sm:$0xff]
    %v45 = vld [vmem:[%s1 + $0x58] sm:$0xff]
    %v46 = vld [vmem:[%s1 + $0x60] sm:$0xff]
    %v47 = vld [vmem:[%s1 + $0x68] sm:$0xff]
    %v48 = vld [vmem:[%s1 + $0x70] sm:$0xff]
    %v49 = vld [vmem:[%s1 + $0x78] sm:$0xff]
    %v50 = vmul.f32 %v18, %v18
    %v51 = vmul.f32 %v19, %v19
    %v52 = vmul.f32 %v20, %v20
    %v53 = vmul.f32 %v21, %v21
    %v54 = vmul.f32 %v22, %v22
    %v55 = vmul.f32 %v23, %v23
    %v56 = vmul.f32 %v24, %v24
    %v57 = vmul.f32 %v25, %v25
    %v58 = vmul.f32 %v26, %v26
    %v59 = vmul.f32 %v27, %v27
    %v60 = vmul.f32 %v28, %v28
    %v61 = vmul.f32 %v29, %v29
    %v62 = vmul.f32 %v30, %v30
    %v63 = vmul.f32 %v31, %v31
    %v64 = vmul.f32 %v32, %v32
    %v65 = vmul.f32 %v33, %v33
    %v66 = vmul.f32 %v34, %v34
    %v67 = vmul.f32 %v35, %v35
    %v68 = vmul.f32 %v36, %v36
    %v69 = vmul.f32 %v37, %v37
    %v70 = vmul.f32 %v38, %v38
    %v71 = vmul.f32 %v39, %v39
    %v72 = vmul.f32 %v40, %v40
    %v73 = vmul.f32 %v41, %v41
    %v74 = vmul.f32 %v42, %v42
    %v75 = vmul.f32 %v43, %v43
    %v76 = vmul.f32 %v44, %v44
    %v77 = vmul.f32 %v45, %v45
    %v78 = vmul.f32 %v46, %v46
    %v79 = vmul.f32 %v47, %v47
    %v80 = vmul.f32 %v48, %v48
    %v81 = vmul.f32 %v49, %v49
    %v82 = vadd.f32 %v50, %v66
    %v83 = vadd.f32 %v51, %v67
    %v84 = vadd.f32 %v52, %v68
    %v85 = vadd.f32 %v53, %v69
    %v86 = vadd.f32 %v54, %v70
    %v87 = vadd.f32 %v55, %v71
    %v88 = vadd.f32 %v56, %v72
    %v89 = vadd.f32 %v57, %v73
    %v90 = vadd.f32 %v58, %v74
    %v91 = vadd.f32 %v59, %v75
    %v92 = vadd.f32 %v60, %v76
    %v93 = vadd.f32 %v61, %v77
    %v94 = vadd.f32 %v62, %v78
    %v95 = vadd.f32 %v63, %v79
    %v96 = vadd.f32 %v64, %v80
    %v97 = vadd.f32 %v65, %v81
    %v98 = vpack.c.bf16 %v83, %v82
    %v99 = vpack.c.bf16 %v85, %v84
    %v100 = vpack.c.bf16 %v87, %v86
    %v101 = vpack.c.bf16 %v89, %v88
    %v102 = vpack.c.bf16 %v91, %v90
    %v103 = vpack.c.bf16 %v93, %v92
    %v104 = vpack.c.bf16 %v95, %v94
    %v105 = vpack.c.bf16 %v97, %v96
    %v106 = vld [vmem:[%s2] sm:$0xf]
    %v107 = vld [vmem:[%s2 + $0x4] sm:$0xf]
    %v108 = vld [vmem:[%s2 + $0x8] sm:$0xf]
    %v109 = vld [vmem:[%s2 + $0xc] sm:$0xf]
    %v110 = vld [vmem:[%s2 + $0x10] sm:$0xf]
    %v111 = vld [vmem:[%s2 + $0x14] sm:$0xf]
    %v112 = vld [vmem:[%s2 + $0x18] sm:$0xf]
    %v113 = vld [vmem:[%s2 + $0x1c] sm:$0xf]
    %v114 = vld [vmem:[%s2 + $0x20] sm:$0xf]
    %v115 = vld [vmem:[%s2 + $0x24] sm:$0xf]
    %v116 = vld [vmem:[%s2 + $0x28] sm:$0xf]
    %v117 = vld [vmem:[%s2 + $0x2c] sm:$0xf]
    %v118 = vld [vmem:[%s2 + $0x30] sm:$0xf]
    %v119 = vld [vmem:[%s2 + $0x34] sm:$0xf]
    %v120 = vld [vmem:[%s2 + $0x38] sm:$0xf]
    %v121 = vld [vmem:[%s2 + $0x3c] sm:$0xf]
    %v138 = vunpack.c.l.b16 %v106
    %v139 = vunpack.c.l.b16 %v107
    %v140 = vunpack.c.l.b16 %v108
    %v141 = vunpack.c.l.b16 %v109
    %v142 = vunpack.c.l.b16 %v110
    %v143 = vunpack.c.l.b16 %v111
    %v144 = vunpack.c.l.b16 %v112
    %v145 = vunpack.c.l.b16 %v113
    %v146 = vunpack.c.l.b16 %v114
    %v147 = vunpack.c.l.b16 %v115
    %v148 = vunpack.c.l.b16 %v116
    %v149 = vunpack.c.l.b16 %v117
    %v150 = vunpack.c.l.b16 %v118
    %v151 = vunpack.c.l.b16 %v119
    %v152 = vunpack.c.l.b16 %v120
    %v153 = vunpack.c.l.b16 %v121
    %v154 = vpack.c.b16 %v139, %v138
    %v155 = vpack.c.b16 %v141, %v140
    %v156 = vpack.c.b16 %v143, %v142
    %v157 = vpack.c.b16 %v145, %v144
    %v158 = vpack.c.b16 %v147, %v146
    %v159 = vpack.c.b16 %v149, %v148
    %v160 = vpack.c.b16 %v151, %v150
    %v161 = vpack.c.b16 %v153, %v152
    %170 = vmatpush.bf16.msra.mxu0 %v105
    %171 = vmatpush.bf16.msra.mxu0 %v104
    %172 = vmatpush.bf16.msra.mxu0 %v103
    %173 = vmatpush.bf16.msra.mxu0 %v102
    %174 = vmatpush.bf16.msra.mxu0 %v101
    %175 = vmatpush.bf16.msra.mxu0 %v100
    %176 = vmatpush.bf16.msra.mxu0 %v99
    %177 = vmatpush.bf16.msra.mxu0 %v98
    %178 = vmatmul.bf16.gmra.mxu0 %v154
    %v179 = vpop.f32.mrf.mxu0
    %v180 = vadd.f32 0.0, %v179
    %v181 = vpop.f32.mrf.mxu0
    %v182 = vadd.f32 0.0, %v181
    %183 = vmatmul.bf16.gmra.mxu0 %v155
    %v184 = vpop.f32.mrf.mxu0
    %v185 = vadd.f32 0.0, %v184
    %v186 = vpop.f32.mrf.mxu0
    %v187 = vadd.f32 0.0, %v186
    %188 = vmatmul.bf16.gmra.mxu0 %v156
    %v189 = vpop.f32.mrf.mxu0
    %v190 = vadd.f32 0.0, %v189
    %v191 = vpop.f32.mrf.mxu0
    %v192 = vadd.f32 0.0, %v191
    %193 = vmatmul.bf16.gmra.mxu0 %v157
    %v194 = vpop.f32.mrf.mxu0
    %v195 = vadd.f32 0.0, %v194
    %v196 = vpop.f32.mrf.mxu0
    %v197 = vadd.f32 0.0, %v196
    %198 = vmatmul.bf16.gmra.mxu0 %v158
    %v199 = vpop.f32.mrf.mxu0
    %v200 = vadd.f32 0.0, %v199
    %v201 = vpop.f32.mrf.mxu0
    %v202 = vadd.f32 0.0, %v201
    %203 = vmatmul.bf16.gmra.mxu0 %v159
    %v204 = vpop.f32.mrf.mxu0
    %v205 = vadd.f32 0.0, %v204
    %v206 = vpop.f32.mrf.mxu0
    %v207 = vadd.f32 0.0, %v206
    %208 = vmatmul.bf16.gmra.mxu0 %v160
    %v209 = vpop.f32.mrf.mxu0
    %v210 = vadd.f32 0.0, %v209
    %v211 = vpop.f32.mrf.mxu0
    %v212 = vadd.f32 0.0, %v211
    %213 = vmatmul.bf16.gmra.mxu0 %v161
    %v214 = vpop.f32.mrf.mxu0
    %v215 = vadd.f32 0.0, %v214
    %v216 = vpop.f32.mrf.mxu0
    %v217 = vadd.f32 0.0, %v216
    %218 = vdwg.mxu0
    %v219 = vpack.c.bf16 %v182, %v180
    %v220 = vpack.c.bf16 %v187, %v185
    %v221 = vpack.c.bf16 %v192, %v190
    %v222 = vpack.c.bf16 %v197, %v195
    %v223 = vpack.c.bf16 %v202, %v200
    %v224 = vpack.c.bf16 %v207, %v205
    %v225 = vpack.c.bf16 %v212, %v210
    %v226 = vpack.c.bf16 %v217, %v215
    %v227 = vld [vmem:[%s3] sm:$0xf]
    %v228 = vld [vmem:[%s3 + $0x4] sm:$0xf]
    %v229 = vld [vmem:[%s3 + $0x8] sm:$0xf]
    %v230 = vld [vmem:[%s3 + $0xc] sm:$0xf]
    %v231 = vld [vmem:[%s3 + $0x10] sm:$0xf]
    %v232 = vld [vmem:[%s3 + $0x14] sm:$0xf]
    %v233 = vld [vmem:[%s3 + $0x18] sm:$0xf]
    %v234 = vld [vmem:[%s3 + $0x1c] sm:$0xf]
    %v235 = vld [vmem:[%s3 + $0x20] sm:$0xf]
    %v236 = vld [vmem:[%s3 + $0x24] sm:$0xf]
    %v237 = vld [vmem:[%s3 + $0x28] sm:$0xf]
    %v238 = vld [vmem:[%s3 + $0x2c] sm:$0xf]
    %v239 = vld [vmem:[%s3 + $0x30] sm:$0xf]
    %v240 = vld [vmem:[%s3 + $0x34] sm:$0xf]
    %v241 = vld [vmem:[%s3 + $0x38] sm:$0xf]
    %v242 = vld [vmem:[%s3 + $0x3c] sm:$0xf]
    %v259 = vunpack.c.l.b16 %v227
    %v260 = vunpack.c.l.b16 %v228
    %v261 = vunpack.c.l.b16 %v229
    %v262 = vunpack.c.l.b16 %v230
    %v263 = vunpack.c.l.b16 %v231
    %v264 = vunpack.c.l.b16 %v232
    %v265 = vunpack.c.l.b16 %v233
    %v266 = vunpack.c.l.b16 %v234
    %v267 = vunpack.c.l.b16 %v235
    %v268 = vunpack.c.l.b16 %v236
    %v269 = vunpack.c.l.b16 %v237
    %v270 = vunpack.c.l.b16 %v238
    %v271 = vunpack.c.l.b16 %v239
    %v272 = vunpack.c.l.b16 %v240
    %v273 = vunpack.c.l.b16 %v241
    %v274 = vunpack.c.l.b16 %v242
    %v275 = vpack.c.b16 %v260, %v259
    %v276 = vpack.c.b16 %v262, %v261
    %v277 = vpack.c.b16 %v264, %v263
    %v278 = vpack.c.b16 %v266, %v265
    %v279 = vpack.c.b16 %v268, %v267
    %v280 = vpack.c.b16 %v270, %v269
    %v281 = vpack.c.b16 %v272, %v271
    %v282 = vpack.c.b16 %v274, %v273
    %291 = vmatpush.bf16.msra.mxu0 %v282
    %292 = vmatpush.bf16.msra.mxu0 %v281
    %293 = vmatpush.bf16.msra.mxu0 %v280
    %294 = vmatpush.bf16.msra.mxu0 %v279
    %295 = vmatpush.bf16.msra.mxu0 %v278
    %296 = vmatpush.bf16.msra.mxu0 %v277
    %297 = vmatpush.bf16.msra.mxu0 %v276
    %298 = vmatpush.bf16.msra.mxu0 %v275
    %299 = vmatmul.bf16.gmra.mxu0 %v219
    %v300 = vpop.f32.mrf.mxu0
    %v301 = vadd.f32 0.0, %v300
    %v302 = vpop.f32.mrf.mxu0
    %v303 = vadd.f32 0.0, %v302
    %304 = vmatmul.bf16.gmra.mxu0 %v220
    %v305 = vpop.f32.mrf.mxu0
    %v306 = vadd.f32 0.0, %v305
    %v307 = vpop.f32.mrf.mxu0
    %v308 = vadd.f32 0.0, %v307
    %309 = vmatmul.bf16.gmra.mxu0 %v221
    %v310 = vpop.f32.mrf.mxu0
    %v311 = vadd.f32 0.0, %v310
    %v312 = vpop.f32.mrf.mxu0
    %v313 = vadd.f32 0.0, %v312
    %314 = vmatmul.bf16.gmra.mxu0 %v222
    %v315 = vpop.f32.mrf.mxu0
    %v316 = vadd.f32 0.0, %v315
    %v317 = vpop.f32.mrf.mxu0
    %v318 = vadd.f32 0.0, %v317
    %319 = vmatmul.bf16.gmra.mxu0 %v223
    %v320 = vpop.f32.mrf.mxu0
    %v321 = vadd.f32 0.0, %v320
    %v322 = vpop.f32.mrf.mxu0
    %v323 = vadd.f32 0.0, %v322
    %324 = vmatmul.bf16.gmra.mxu0 %v224
    %v325 = vpop.f32.mrf.mxu0
    %v326 = vadd.f32 0.0, %v325
    %v327 = vpop.f32.mrf.mxu0
    %v328 = vadd.f32 0.0, %v327
    %329 = vmatmul.bf16.gmra.mxu0 %v225
    %v330 = vpop.f32.mrf.mxu0
    %v331 = vadd.f32 0.0, %v330
    %v332 = vpop.f32.mrf.mxu0
    %v333 = vadd.f32 0.0, %v332
    %334 = vmatmul.bf16.gmra.mxu0 %v226
    %v335 = vpop.f32.mrf.mxu0
    %v336 = vadd.f32 0.0, %v335
    %v337 = vpop.f32.mrf.mxu0
    %v338 = vadd.f32 0.0, %v337
    %339 = vdwg.mxu0
    %v340 = vmin.f32 %v301, %v311
    %v341 = vmin.f32 %v303, %v313
    %v342 = vmin.f32 %v306, %v316
    %v343 = vmin.f32 %v308, %v318
    %v344 = vmin.f32 %v340, %v321
    %v345 = vmin.f32 %v341, %v323
    %v346 = vmin.f32 %v342, %v326
    %v347 = vmin.f32 %v343, %v328
    %v348 = vmin.f32 %v344, %v331
    %v349 = vmin.f32 %v345, %v333
    %v350 = vmin.f32 %v346, %v336
    %v351 = vmin.f32 %v347, %v338
    %v352 = vmin.f32 %v348, %v349
    %v353 = vmin.f32 %v350, %v351
    %v354 = vmin.f32 %v352, %v353
    %355 = vmin.xlane.f32.xlu0 %v354
    %v356 = vpop.xlane.xlu0 %355
    %v357 = vrot.slane %v356, 4
    %v358 = vmin.f32 %v356, %v357
    %v359 = vrot.slane %v358, 2
    %v360 = vmin.f32 %v358, %v359
    %v361 = vrot.slane %v360, 1
    %v362 = vmin.f32 %v360, %v361
    %s363 = vtos %v362
    %v364 = vmax.f32 %v301, %v311
    %v365 = vmax.f32 %v303, %v313
    %v366 = vmax.f32 %v306, %v316
    %v367 = vmax.f32 %v308, %v318
    %v368 = vmax.f32 %v364, %v321
    %v369 = vmax.f32 %v365, %v323
    %v370 = vmax.f32 %v366, %v326
    %v371 = vmax.f32 %v367, %v328
    %v372 = vmax.f32 %v368, %v331
    %v373 = vmax.f32 %v369, %v333
    %v374 = vmax.f32 %v370, %v336
    %v375 = vmax.f32 %v371, %v338
    %v376 = vmax.f32 %v372, %v373
    %v377 = vmax.f32 %v374, %v375
    %v378 = vmax.f32 %v376, %v377
    %379 = vmax.xlane.f32.xlu0 %v378
    %v380 = vpop.xlane.xlu0 %379
    %v381 = vrot.slane %v380, 4
    %v382 = vmax.f32 %v380, %v381
    %v383 = vrot.slane %v382, 2
    %v384 = vmax.f32 %v382, %v383
    %v385 = vrot.slane %v384, 1
    %v386 = vmax.f32 %v384, %v385
    %s387 = vtos %v386
    %v388 = vstv %s363
    %v389 = vsub.f32 %v301, %v388
    %v390 = vsub.f32 %v303, %v388
    %v391 = vsub.f32 %v306, %v388
    %v392 = vsub.f32 %v308, %v388
    %v393 = vsub.f32 %v311, %v388
    %v394 = vsub.f32 %v313, %v388
    %v395 = vsub.f32 %v316, %v388
    %v396 = vsub.f32 %v318, %v388
    %v397 = vsub.f32 %v321, %v388
    %v398 = vsub.f32 %v323, %v388
    %v399 = vsub.f32 %v326, %v388
    %v400 = vsub.f32 %v328, %v388
    %v401 = vsub.f32 %v331, %v388
    %v402 = vsub.f32 %v333, %v388
    %v403 = vsub.f32 %v336, %v388
    %v404 = vsub.f32 %v338, %v388
    %s405 = ssub.f32 %s387, %s363
    %v406 = vstv %s405
    %v407 = vrcp.pop %v406
    %v408 = vmul.f32 %v406, %v407
    %v409 = vsub.f32 1.0, %v408
    %v410 = vmul.f32 %v407, %v409
    %v411 = vadd.f32 %v407, %v410
    %vm412 = vweird.f32 %v406
    %vm413 = vweird.f32 %v407
    %vm414 = vmor %vm412, %vm413
    %v415 = vsel %vm414, %v407, %v411
    %v416 = vand.u32 2147483647, %v406
    %vm417 = vcmp.eq.f32.partialorder %v416, 8.507059e+37
    %v418 = vand.u32 %v406, 2147483648
    %v419 = vor.u32 1.1754944e-38, %v418
    %v420 = vsel %vm417, %v419, %v415
    %s421 = vtos %v420
    %v422 = vstv %s421
    %v423 = vmul.f32 %v389, %v422
    %v424 = vmul.f32 %v390, %v422
    %v425 = vmul.f32 %v391, %v422
    %v426 = vmul.f32 %v392, %v422
    %v427 = vmul.f32 %v393, %v422
    %v428 = vmul.f32 %v394, %v422
    %v429 = vmul.f32 %v395, %v422
    %v430 = vmul.f32 %v396, %v422
    %v431 = vmul.f32 %v397, %v422
    %v432 = vmul.f32 %v398, %v422
    %v433 = vmul.f32 %v399, %v422
    %v434 = vmul.f32 %v400, %v422
    %v435 = vmul.f32 %v401, %v422
    %v436 = vmul.f32 %v402, %v422
    %v437 = vmul.f32 %v403, %v422
    %v438 = vmul.f32 %v404, %v422
    %439 = vst [vmem:[#allocation2] sm:$0xff] %v423
    %440 = vst [vmem:[#allocation2 + $0x8] sm:$0xff] %v424
    %441 = vst [vmem:[#allocation2 + $0x10] sm:$0xff] %v425
    %442 = vst [vmem:[#allocation2 + $0x18] sm:$0xff] %v426
    %443 = vst [vmem:[#allocation2 + $0x20] sm:$0xff] %v427
    %444 = vst [vmem:[#allocation2 + $0x28] sm:$0xff] %v428
    %445 = vst [vmem:[#allocation2 + $0x30] sm:$0xff] %v429
    %446 = vst [vmem:[#allocation2 + $0x38] sm:$0xff] %v430
    %447 = vst [vmem:[#allocation2 + $0x40] sm:$0xff] %v431
    %448 = vst [vmem:[#allocation2 + $0x48] sm:$0xff] %v432
    %449 = vst [vmem:[#allocation2 + $0x50] sm:$0xff] %v433
    %450 = vst [vmem:[#allocation2 + $0x58] sm:$0xff] %v434
    %451 = vst [vmem:[#allocation2 + $0x60] sm:$0xff] %v435
    %452 = vst [vmem:[#allocation2 + $0x68] sm:$0xff] %v436
    %453 = vst [vmem:[#allocation2 + $0x70] sm:$0xff] %v437
    %454 = vst [vmem:[#allocation2 + $0x78] sm:$0xff] %v438
    // Predicated region
    $region18: #{cal_contrast_forward.5} parent=1 // pred_check
      _
    $region19: #{cal_contrast_forward.5} parent=1 // pred_check_branch
      %456 = sbr.rel (0) target = $region21
    $region20: #{cal_contrast_forward.5} parent=1 // pred_region
      %458 = vsyncadd [#allocation3], 0
      %s459 = sshll.u32 [#allocation2], 4
      %s460 = int_to_ptr.vmem [resolvable:$true] %s459
      %s461 = sshll.u32 %s4, 4
      %s462 = int_to_ptr.hbm [resolvable:$true] %s461
      %467 = dma.vmem_to_hbm [thread:$0]  %s460, 2048, %s462, [#allocation3], 128, 128, 8
    $region21: #{cal_contrast_forward.5} parent=1 // pred_fallthru
      _
    // Predicated region
    $region22: #{cal_contrast_forward.5} parent=1 // pred_check
      _
    $region23: #{cal_contrast_forward.5} parent=1 // pred_check_branch
      %469 = sbr.rel (0) target = $region25
    $region24: #{cal_contrast_forward.5} parent=1 // pred_region
      %471 = dma.done [#allocation3], 2048
    $region25: #{cal_contrast_forward.5} parent=1 // pred_fallthru
      _
    %472 = vsyncpa [#allocation3], 1

// kernel: cal_contrast_forward.3
$region0: #{cal_contrast_forward.3}
  #allocation0 [shape = 'u32[]', space=smem, size = 0x4, offset = 0x4, fixed_abs, tag = 'smem constant byte address 0x4 - core index']
  #allocation1 [shape = 'u32[72,128]{1,0:T(1,128)}', space=vmem, size = 0x9000, scoped, tag = 'internal scratch']
  %s0 = inlined_call_operand.vmem [shape: f32[3,128,128], index: 0, kind: input, shape index: {}]
  %s1 = inlined_call_operand.vmem [shape: bf16[2,128,128], index: 1, kind: input, shape index: {}]
  %s2 = inlined_call_operand.vmem [shape: bf16[256,256], index: 2, kind: input, shape index: {}]
  %s3 = inlined_call_operand.hbm [shape: f32[3,128,128], index: 3, kind: output, shape index: {}]
  %s4 = sld [smem:[#allocation0]]
  $region45: #{cal_contrast_forward.3} parent=0
    _
  %s6 = ssub.s32 1, %s4
  %s7 = scalar_select 0, %s6, %s4
  $region1: #{cal_contrast_forward.3} parent=0
    #allocation2 [shape = 'u8[65536]{0}', space=vmem, size = 0x10000, scoped, tag = 'output window, operand 0']
    #allocation3 [shape = 's32[2]{0}', space=sflag, size = 0x8, scoped, tag = 'scoped memory for cal_contrast_forward.3']
    %8 = vsyncpa [#allocation3], 0
    %s9 = scalar_lea.sflag [#allocation3], 1
    %10 = vsyncpa %s9, 0
    loop: start=0, step=1, limit=8
    $region2: #{cal_contrast_forward.3} parent=1 // loop_pre_header
      _
    $region3: #{cal_contrast_forward.3} parent=1 // loop_header
      %s12 = sphi 0, %s16
      %p13 = scmp.ge.s32.totalorder %s12, 8
      %s19 = sphi 0, %s31
      %s20 = sphi 0, %s27
      %s21 = sphi 0, %s19
      %s22 = sphi 0, %s20
      %s23 = sphi 0, %s21
      %s24 = sphi 0, %s22
      %s34 = sphi 0, %s36
      %s37 = sphi 0, %s34
      %s38 = sphi 0, %s37
      %s54 = sphi 0, %s38
      %s60 = sphi 0, %s62
      %s63 = sphi 0, %s60
      %s64 = sphi 0, %s63
      %s80 = sphi 0, %s64
      %s84 = sphi 0, %s84
      %s86 = sphi 0, %s84
      %s87 = sphi 0, %s86
      %s101 = sphi 0, %s87
      %s109 = sphi 0, %s111
      %s112 = sphi 0, %s109
      %s113 = sphi 0, %s112
      %s129 = sphi 0, %s113
    $region4: #{cal_contrast_forward.3} parent=1 // loop_header_branch
      %15 = sbr.rel (%p13) target = $region8
    $region5: #{cal_contrast_forward.3} parent=1 // loop_body
      %s17 = ssub.s32 %s12, 1
      %s18 = ssub.s32 %s12, 2
      %s25 = sadd.s32 1, %s20
      %p26 = scmp.ge.s32.totalorder %s25, 2
      %s27 = scalar_select %p26, 0, %s25
      %s28 = sadd.s32 1, %s19
      %s29 = scalar_select %p26, %s28, %s19
      %p30 = scmp.ge.s32.totalorder %s29, 3
      %s31 = scalar_select %p30, 0, %s29
      %s32 = ssub.s32 %s19, %s31
      %p33 = scmp.eq.s32.totalorder %s32, 0
      %s35 = sadd.s32 %s34, 1
      %s36 = scalar_select %p33, %s34, %s35
      %p39 = pneg %p33
      %p40 = scmp.eq.s32.totalorder %s12, 5
      %p41 = por %p39, %p40
      %p42 = scmp.ne.s32.totalorder %s34, %s37
      %p43 = scmp.eq.s32.totalorder %s12, 0
      %p44 = por %p42, %p43
      %p45 = scmp.ne.s32.totalorder %s34, %s37
      %p46 = scmp.eq.s32.totalorder %s17, 5
      %p47 = por %p45, %p46
      %p48 = scmp.ne.s32.totalorder %s37, %s38
      %p49 = scmp.eq.s32.totalorder %s17, 0
      %p50 = por %p48, %p49
      %p51 = scmp.ne.s32.totalorder %s37, %s38
      %p52 = scmp.eq.s32.totalorder %s18, 5
      %p53 = por %p51, %p52
      %p55 = scmp.ne.s32.totalorder %s38, %s54
      %p56 = scmp.eq.s32.totalorder %s18, 0
      %p57 = por %p55, %p56
      %s58 = ssub.s32 %s20, %s27
      %p59 = scmp.eq.s32.totalorder %s58, 0
      %s61 = sadd.s32 %s60, 1
      %s62 = scalar_select %p59, %s60, %s61
      %p65 = pneg %p59
      %p66 = scmp.eq.s32.totalorder %s12, 5
      %p67 = por %p65, %p66
      %p68 = scmp.ne.s32.totalorder %s60, %s63
      %p69 = scmp.eq.s32.totalorder %s12, 0
      %p70 = por %p68, %p69
      %p71 = scmp.ne.s32.totalorder %s60, %s63
      %p72 = scmp.eq.s32.totalorder %s17, 5
      %p73 = por %p71, %p72
      %p74 = scmp.ne.s32.totalorder %s63, %s64
      %p75 = scmp.eq.s32.totalorder %s17, 0
      %p76 = por %p74, %p75
      %p77 = scmp.ne.s32.totalorder %s63, %s64
      %p78 = scmp.eq.s32.totalorder %s18, 5
      %p79 = por %p77, %p78
      %p81 = scmp.ne.s32.totalorder %s64, %s80
      %p82 = scmp.eq.s32.totalorder %s18, 0
      %p83 = por %p81, %p82
      %s85 = sadd.s32 %s84, 1
      %p88 = scmp.eq.s32.totalorder %s12, 5
      %p89 = scmp.ne.s32.totalorder %s84, %s86
      %p90 = scmp.eq.s32.totalorder %s12, 0
      %p91 = por %p89, %p90
      %p92 = scmp.ne.s32.totalorder %s84, %s86
      %p93 = scmp.eq.s32.totalorder %s17, 5
      %p94 = por %p92, %p93
      %p95 = scmp.ne.s32.totalorder %s86, %s87
      %p96 = scmp.eq.s32.totalorder %s17, 0
      %p97 = por %p95, %p96
      %p98 = scmp.ne.s32.totalorder %s86, %s87
      %p99 = scmp.eq.s32.totalorder %s18, 5
      %p100 = por %p98, %p99
      %p102 = scmp.ne.s32.totalorder %s87, %s101
      %p103 = scmp.eq.s32.totalorder %s18, 0
      %p104 = por %p102, %p103
      %s105 = ssub.s32 %s19, %s31
      %s106 = ssub.s32 %s20, %s27
      %s107 = sor.u32 %s105, %s106
      %p108 = scmp.eq.s32.totalorder %s107, 0
      %s110 = sadd.s32 %s109, 1
      %s111 = scalar_select %p108, %s109, %s110
      %p114 = pneg %p108
      %p115 = scmp.eq.s32.totalorder %s12, 5
      %p116 = por %p114, %p115
      %p117 = scmp.ne.s32.totalorder %s109, %s112
      %p118 = scmp.eq.s32.totalorder %s12, 0
      %p119 = por %p117, %p118
      %p120 = scmp.ne.s32.totalorder %s109, %s112
      %p121 = scmp.eq.s32.totalorder %s17, 5
      %p122 = por %p120, %p121
      %p123 = scmp.ne.s32.totalorder %s112, %s113
      %p124 = scmp.eq.s32.totalorder %s17, 0
      %p125 = por %p123, %p124
      %p126 = scmp.ne.s32.totalorder %s112, %s113
      %p127 = scmp.eq.s32.totalorder %s18, 5
      %p128 = por %p126, %p127
      %p130 = scmp.ne.s32.totalorder %s113, %s129
      %p131 = scmp.eq.s32.totalorder %s18, 0
      %p132 = por %p130, %p131
      %p133 = scmp.le.s32.totalorder 1, %s12
      %p134 = scmp.lt.s32.totalorder %s12, 7
      %p135 = pnand %p133, %p134
      %p136 = pneg %p135
      // Predicated region
      $region9: #{cal_contrast_forward.3} parent=5 // pred_check
        _
      $region10: #{cal_contrast_forward.3} parent=5 // pred_check_branch
        %138 = sbr.rel (%p135) target = $region12
      $region11: #{cal_contrast_forward.3} parent=5 // pred_region
        %s139 = ssub.s32 %s12, 1
        // Predicated region
        $region13: #{cal_contrast_forward.3} parent=11 // pred_check
          %p140 = pneg %p97
        $region14: #{cal_contrast_forward.3} parent=11 // pred_check_branch
          %142 = sbr.rel (%p140) target = $region16
        $region15: #{cal_contrast_forward.3} parent=11 // pred_region
          _
        $region16: #{cal_contrast_forward.3} parent=11 // pred_fallthru
          _
      $region12: #{cal_contrast_forward.3} parent=5 // pred_fallthru
        _
      %p143 = scmp.lt.s32.totalorder %s12, 6
      // Predicated region
      $region17: #{cal_contrast_forward.3} parent=5 // pred_check
        %p144 = pneg %p143
      $region18: #{cal_contrast_forward.3} parent=5 // pred_check_branch
        %146 = sbr.rel (%p144) target = $region20
      $region19: #{cal_contrast_forward.3} parent=5 // pred_region
        // Predicated region
        $region21: #{cal_contrast_forward.3} parent=19 // pred_check
          %p147 = pneg %p44
        $region22: #{cal_contrast_forward.3} parent=19 // pred_check_branch
          %149 = sbr.rel (%p147) target = $region24
        $region23: #{cal_contrast_forward.3} parent=19 // pred_region
          %p150 = scmp.lt.s32.totalorder %s19, 2
          %s151 = scalar_select %p150, %s19, 2
          %s152 = smul.addr %s151, 16
          %s153 = smul.addr %s152, 8
          %s154 = scalar_lea.vmem %s0, %s153
        $region24: #{cal_contrast_forward.3} parent=19 // pred_fallthru
          _
        // Predicated region
        $region25: #{cal_contrast_forward.3} parent=19 // pred_check
          %p155 = pneg %p70
        $region26: #{cal_contrast_forward.3} parent=19 // pred_check_branch
          %157 = sbr.rel (%p155) target = $region28
        $region27: #{cal_contrast_forward.3} parent=19 // pred_region
          %p158 = scmp.lt.s32.totalorder %s20, 1
          %s159 = scalar_select %p158, %s20, 1
          %s160 = smul.addr %s159, 16
          %s161 = smul.addr %s160, 4
          %s162 = scalar_lea.vmem %s1, %s161
        $region28: #{cal_contrast_forward.3} parent=19 // pred_fallthru
          _
      $region20: #{cal_contrast_forward.3} parent=5 // pred_fallthru
        _
      %p163 = scmp.le.s32.totalorder 1, %s12
      %p164 = scmp.lt.s32.totalorder %s12, 7
      %p165 = pnand %p163, %p164
      %p166 = pneg %p165
      // Predicated region
      $region29: #{cal_contrast_forward.3} parent=5 // pred_check
        _
      $region30: #{cal_contrast_forward.3} parent=5 // pred_check_branch
        %168 = sbr.rel (%p165) target = $region32
      $region31: #{cal_contrast_forward.3} parent=5 // pred_region
        %s169 = ssub.s32 %s12, 1
        %p170 = scmp.lt.s32.totalorder %s21, 2
        %s171 = scalar_select %p170, %s21, 2
        %s172 = smul.addr %s171, 16
        %s173 = smul.addr %s172, 8
        %s174 = scalar_lea.vmem %s0, %s173
        %p175 = pneg %p50
        %p176 = pneg %p47
        %p177 = scmp.lt.s32.totalorder %s22, 1
        %s178 = scalar_select %p177, %s22, 1
        %s179 = smul.addr %s178, 16
        %s180 = smul.addr %s179, 4
        %s181 = scalar_lea.vmem %s1, %s180
        %p182 = pneg %p76
        %p183 = pneg %p73
        %p184 = pneg %p97
        %p185 = pneg %p94
        %p186 = pneg %p125
        %p187 = pneg %p122
        %s188 = sand.u32 %s112, 1
        %s189 = scalar_lea.sflag [#allocation3], %s188
        %s190 = sand.u32 %s112, 1
        %s191 = smul.addr %s190, 64
        %s192 = scalar_lea.vmem [#allocation2], %s191
        %p193 = scmp.lt.s32.totalorder %s21, 2
        %s194 = scalar_select %p193, %s21, 2
        %s195 = smul.addr %s194, 16
        %s196 = smul.addr %s195, 8
        %s197 = scalar_lea.vmem %s0, %s196
        %p198 = scmp.lt.s32.totalorder %s22, 1
        %s199 = scalar_select %p198, %s22, 1
        %s200 = smul.addr %s199, 16
        %s201 = smul.addr %s200, 4
        %s202 = scalar_lea.vmem %s1, %s201
        %s203 = smul.u32 8, %s22
        %v204 = vld [vmem:[%s197] sm:$0xff]
        %v205 = vld [vmem:[%s197 + $0x8] sm:$0xff]
        %v206 = vld [vmem:[%s197 + $0x10] sm:$0xff]
        %v207 = vld [vmem:[%s197 + $0x18] sm:$0xff]
        %v208 = vld [vmem:[%s197 + $0x20] sm:$0xff]
        %v209 = vld [vmem:[%s197 + $0x28] sm:$0xff]
        %v210 = vld [vmem:[%s197 + $0x30] sm:$0xff]
        %v211 = vld [vmem:[%s197 + $0x38] sm:$0xff]
        %v212 = vld [vmem:[%s197 + $0x40] sm:$0xff]
        %v213 = vld [vmem:[%s197 + $0x48] sm:$0xff]
        %v214 = vld [vmem:[%s197 + $0x50] sm:$0xff]
        %v215 = vld [vmem:[%s197 + $0x58] sm:$0xff]
        %v216 = vld [vmem:[%s197 + $0x60] sm:$0xff]
        %v217 = vld [vmem:[%s197 + $0x68] sm:$0xff]
        %v218 = vld [vmem:[%s197 + $0x70] sm:$0xff]
        %v219 = vld [vmem:[%s197 + $0x78] sm:$0xff]
        %v220 = vpack.c.bf16 %v205, %v204
        %v221 = vpack.c.bf16 %v207, %v206
        %v222 = vpack.c.bf16 %v209, %v208
        %v223 = vpack.c.bf16 %v211, %v210
        %v224 = vpack.c.bf16 %v213, %v212
        %v225 = vpack.c.bf16 %v215, %v214
        %v226 = vpack.c.bf16 %v217, %v216
        %v227 = vpack.c.bf16 %v219, %v218
        %v228 = vld [vmem:[%s202] sm:$0xf]
        %v229 = vld [vmem:[%s202 + $0x4] sm:$0xf]
        %v230 = vld [vmem:[%s202 + $0x8] sm:$0xf]
        %v231 = vld [vmem:[%s202 + $0xc] sm:$0xf]
        %v232 = vld [vmem:[%s202 + $0x10] sm:$0xf]
        %v233 = vld [vmem:[%s202 + $0x14] sm:$0xf]
        %v234 = vld [vmem:[%s202 + $0x18] sm:$0xf]
        %v235 = vld [vmem:[%s202 + $0x1c] sm:$0xf]
        %v236 = vld [vmem:[%s202 + $0x20] sm:$0xf]
        %v237 = vld [vmem:[%s202 + $0x24] sm:$0xf]
        %v238 = vld [vmem:[%s202 + $0x28] sm:$0xf]
        %v239 = vld [vmem:[%s202 + $0x2c] sm:$0xf]
        %v240 = vld [vmem:[%s202 + $0x30] sm:$0xf]
        %v241 = vld [vmem:[%s202 + $0x34] sm:$0xf]
        %v242 = vld [vmem:[%s202 + $0x38] sm:$0xf]
        %v243 = vld [vmem:[%s202 + $0x3c] sm:$0xf]
        %v260 = vunpack.c.l.b16 %v228
        %v261 = vunpack.c.l.b16 %v229
        %v262 = vunpack.c.l.b16 %v230
        %v263 = vunpack.c.l.b16 %v231
        %v264 = vunpack.c.l.b16 %v232
        %v265 = vunpack.c.l.b16 %v233
        %v266 = vunpack.c.l.b16 %v234
        %v267 = vunpack.c.l.b16 %v235
        %v268 = vunpack.c.l.b16 %v236
        %v269 = vunpack.c.l.b16 %v237
        %v270 = vunpack.c.l.b16 %v238
        %v271 = vunpack.c.l.b16 %v239
        %v272 = vunpack.c.l.b16 %v240
        %v273 = vunpack.c.l.b16 %v241
        %v274 = vunpack.c.l.b16 %v242
        %v275 = vunpack.c.l.b16 %v243
        %v276 = vpack.c.b16 %v261, %v260
        %v277 = vpack.c.b16 %v263, %v262
        %v278 = vpack.c.b16 %v265, %v264
        %v279 = vpack.c.b16 %v267, %v266
        %v280 = vpack.c.b16 %v269, %v268
        %v281 = vpack.c.b16 %v271, %v270
        %v282 = vpack.c.b16 %v273, %v272
        %v283 = vpack.c.b16 %v275, %v274
        %292 = vmatpush.bf16.msra.mxu0 %v227
        %293 = vmatpush.bf16.msra.mxu0 %v226
        %294 = vmatpush.bf16.msra.mxu0 %v225
        %295 = vmatpush.bf16.msra.mxu0 %v224
        %296 = vmatpush.bf16.msra.mxu0 %v223
        %297 = vmatpush.bf16.msra.mxu0 %v222
        %298 = vmatpush.bf16.msra.mxu0 %v221
        %299 = vmatpush.bf16.msra.mxu0 %v220
        %300 = vmatmul.bf16.gmra.mxu0 %v276
        %v301 = vpop.f32.mrf.mxu0
        %v302 = vadd.f32 0.0, %v301
        %v303 = vpop.f32.mrf.mxu0
        %v304 = vadd.f32 0.0, %v303
        %305 = vmatmul.bf16.gmra.mxu0 %v277
        %v306 = vpop.f32.mrf.mxu0
        %v307 = vadd.f32 0.0, %v306
        %v308 = vpop.f32.mrf.mxu0
        %v309 = vadd.f32 0.0, %v308
        %310 = vmatmul.bf16.gmra.mxu0 %v278
        %v311 = vpop.f32.mrf.mxu0
        %v312 = vadd.f32 0.0, %v311
        %v313 = vpop.f32.mrf.mxu0
        %v314 = vadd.f32 0.0, %v313
        %315 = vmatmul.bf16.gmra.mxu0 %v279
        %v316 = vpop.f32.mrf.mxu0
        %v317 = vadd.f32 0.0, %v316
        %v318 = vpop.f32.mrf.mxu0
        %v319 = vadd.f32 0.0, %v318
        %320 = vmatmul.bf16.gmra.mxu0 %v280
        %v321 = vpop.f32.mrf.mxu0
        %v322 = vadd.f32 0.0, %v321
        %v323 = vpop.f32.mrf.mxu0
        %v324 = vadd.f32 0.0, %v323
        %325 = vmatmul.bf16.gmra.mxu0 %v281
        %v326 = vpop.f32.mrf.mxu0
        %v327 = vadd.f32 0.0, %v326
        %v328 = vpop.f32.mrf.mxu0
        %v329 = vadd.f32 0.0, %v328
        %330 = vmatmul.bf16.gmra.mxu0 %v282
        %v331 = vpop.f32.mrf.mxu0
        %v332 = vadd.f32 0.0, %v331
        %v333 = vpop.f32.mrf.mxu0
        %v334 = vadd.f32 0.0, %v333
        %335 = vmatmul.bf16.gmra.mxu0 %v283
        %v336 = vpop.f32.mrf.mxu0
        %v337 = vadd.f32 0.0, %v336
        %v338 = vpop.f32.mrf.mxu0
        %v339 = vadd.f32 0.0, %v338
        %340 = vdwg.mxu0
        %v341 = vpack.c.bf16 %v302, %v302
        %v342 = vpack.c.bf16 %v304, %v304
        %v343 = vpack.c.bf16 %v307, %v307
        %v344 = vpack.c.bf16 %v309, %v309
        %v345 = vpack.c.bf16 %v312, %v312
        %v346 = vpack.c.bf16 %v314, %v314
        %v347 = vpack.c.bf16 %v317, %v317
        %v348 = vpack.c.bf16 %v319, %v319
        %v349 = vpack.c.bf16 %v322, %v322
        %v350 = vpack.c.bf16 %v324, %v324
        %v351 = vpack.c.bf16 %v327, %v327
        %v352 = vpack.c.bf16 %v329, %v329
        %v353 = vpack.c.bf16 %v332, %v332
        %v354 = vpack.c.bf16 %v334, %v334
        %v355 = vpack.c.bf16 %v337, %v337
        %v356 = vpack.c.bf16 %v339, %v339
        %v365 = vunpack.c.l.b16 %v341
        %v366 = vunpack.c.l.b16 %v342
        %v367 = vunpack.c.l.b16 %v343
        %v368 = vunpack.c.l.b16 %v344
        %v369 = vunpack.c.l.b16 %v345
        %v370 = vunpack.c.l.b16 %v346
        %v371 = vunpack.c.l.b16 %v347
        %v372 = vunpack.c.l.b16 %v348
        %v373 = vpack.c.b16 %v366, %v365
        %v374 = vpack.c.b16 %v368, %v367
        %v375 = vpack.c.b16 %v370, %v369
        %v376 = vpack.c.b16 %v372, %v371
        %v389 = vunpack.c.l.b16 %v349
        %v390 = vunpack.c.l.b16 %v350
        %v391 = vunpack.c.l.b16 %v351
        %v392 = vunpack.c.l.b16 %v352
        %v393 = vunpack.c.l.b16 %v353
        %v394 = vunpack.c.l.b16 %v354
        %v395 = vunpack.c.l.b16 %v355
        %v396 = vunpack.c.l.b16 %v356
        %v397 = vpack.c.b16 %v390, %v389
        %v398 = vpack.c.b16 %v392, %v391
        %v399 = vpack.c.b16 %v394, %v393
        %v400 = vpack.c.b16 %v396, %v395
        %v405 = vld [vmem:[%s2] sm:$0xff]
        %v406 = vld [vmem:[%s2 + $0x8] sm:$0xff]
        %v407 = vld [vmem:[%s2 + $0x10] sm:$0xff]
        %v408 = vld [vmem:[%s2 + $0x18] sm:$0xff]
        %v409 = vld [vmem:[%s2 + $0x20] sm:$0xff]
        %v410 = vld [vmem:[%s2 + $0x28] sm:$0xff]
        %v411 = vld [vmem:[%s2 + $0x30] sm:$0xff]
        %v412 = vld [vmem:[%s2 + $0x38] sm:$0xff]
        %v413 = vld [vmem:[%s2 + $0x40] sm:$0xff]
        %v414 = vld [vmem:[%s2 + $0x48] sm:$0xff]
        %v415 = vld [vmem:[%s2 + $0x50] sm:$0xff]
        %v416 = vld [vmem:[%s2 + $0x58] sm:$0xff]
        %v417 = vld [vmem:[%s2 + $0x60] sm:$0xff]
        %v418 = vld [vmem:[%s2 + $0x68] sm:$0xff]
        %v419 = vld [vmem:[%s2 + $0x70] sm:$0xff]
        %v420 = vld [vmem:[%s2 + $0x78] sm:$0xff]
        %v421 = vld [vmem:[%s2 + $0x80] sm:$0xff]
        %v422 = vld [vmem:[%s2 + $0x88] sm:$0xff]
        %v423 = vld [vmem:[%s2 + $0x90] sm:$0xff]
        %v424 = vld [vmem:[%s2 + $0x98] sm:$0xff]
        %v425 = vld [vmem:[%s2 + $0xa0] sm:$0xff]
        %v426 = vld [vmem:[%s2 + $0xa8] sm:$0xff]
        %v427 = vld [vmem:[%s2 + $0xb0] sm:$0xff]
        %v428 = vld [vmem:[%s2 + $0xb8] sm:$0xff]
        %v429 = vld [vmem:[%s2 + $0xc0] sm:$0xff]
        %v430 = vld [vmem:[%s2 + $0xc8] sm:$0xff]
        %v431 = vld [vmem:[%s2 + $0xd0] sm:$0xff]
        %v432 = vld [vmem:[%s2 + $0xd8] sm:$0xff]
        %v433 = vld [vmem:[%s2 + $0xe0] sm:$0xff]
        %v434 = vld [vmem:[%s2 + $0xe8] sm:$0xff]
        %v435 = vld [vmem:[%s2 + $0xf0] sm:$0xff]
        %v436 = vld [vmem:[%s2 + $0xf8] sm:$0xff]
        %v469 = vunpack.c.l.b16 %v405
        %v470 = vunpack.c.h.b16 %v405
        %v471 = vunpack.c.l.b16 %v406
        %v472 = vunpack.c.h.b16 %v406
        %v473 = vunpack.c.l.b16 %v407
        %v474 = vunpack.c.h.b16 %v407
        %v475 = vunpack.c.l.b16 %v408
        %v476 = vunpack.c.h.b16 %v408
        %v477 = vunpack.c.l.b16 %v409
        %v478 = vunpack.c.h.b16 %v409
        %v479 = vunpack.c.l.b16 %v410
        %v480 = vunpack.c.h.b16 %v410
        %v481 = vunpack.c.l.b16 %v411
        %v482 = vunpack.c.h.b16 %v411
        %v483 = vunpack.c.l.b16 %v412
        %v484 = vunpack.c.h.b16 %v412
        %v485 = vunpack.c.l.b16 %v413
        %v486 = vunpack.c.h.b16 %v413
        %v487 = vunpack.c.l.b16 %v414
        %v488 = vunpack.c.h.b16 %v414
        %v489 = vunpack.c.l.b16 %v415
        %v490 = vunpack.c.h.b16 %v415
        %v491 = vunpack.c.l.b16 %v416
        %v492 = vunpack.c.h.b16 %v416
        %v493 = vunpack.c.l.b16 %v417
        %v494 = vunpack.c.h.b16 %v417
        %v495 = vunpack.c.l.b16 %v418
        %v496 = vunpack.c.h.b16 %v418
        %v497 = vunpack.c.l.b16 %v419
        %v498 = vunpack.c.h.b16 %v419
        %v499 = vunpack.c.l.b16 %v420
        %v500 = vunpack.c.h.b16 %v420
        %v501 = vunpack.c.l.b16 %v421
        %v502 = vunpack.c.h.b16 %v421
        %v503 = vunpack.c.l.b16 %v422
        %v504 = vunpack.c.h.b16 %v422
        %v505 = vunpack.c.l.b16 %v423
        %v506 = vunpack.c.h.b16 %v423
        %v507 = vunpack.c.l.b16 %v424
        %v508 = vunpack.c.h.b16 %v424
        %v509 = vunpack.c.l.b16 %v425
        %v510 = vunpack.c.h.b16 %v425
        %v511 = vunpack.c.l.b16 %v426
        %v512 = vunpack.c.h.b16 %v426
        %v513 = vunpack.c.l.b16 %v427
        %v514 = vunpack.c.h.b16 %v427
        %v515 = vunpack.c.l.b16 %v428
        %v516 = vunpack.c.h.b16 %v428
        %v517 = vunpack.c.l.b16 %v429
        %v518 = vunpack.c.h.b16 %v429
        %v519 = vunpack.c.l.b16 %v430
        %v520 = vunpack.c.h.b16 %v430
        %v521 = vunpack.c.l.b16 %v431
        %v522 = vunpack.c.h.b16 %v431
        %v523 = vunpack.c.l.b16 %v432
        %v524 = vunpack.c.h.b16 %v432
        %v525 = vunpack.c.l.b16 %v433
        %v526 = vunpack.c.h.b16 %v433
        %v527 = vunpack.c.l.b16 %v434
        %v528 = vunpack.c.h.b16 %v434
        %v529 = vunpack.c.l.b16 %v435
        %v530 = vunpack.c.h.b16 %v435
        %v531 = vunpack.c.l.b16 %v436
        %v532 = vunpack.c.h.b16 %v436
        %v533 = vpack.c.b16 %v471, %v469
        %v534 = vpack.c.b16 %v472, %v470
        %v535 = vpack.c.b16 %v475, %v473
        %v536 = vpack.c.b16 %v476, %v474
        %v537 = vpack.c.b16 %v479, %v477
        %v538 = vpack.c.b16 %v480, %v478
        %v539 = vpack.c.b16 %v483, %v481
        %v540 = vpack.c.b16 %v484, %v482
        %v541 = vpack.c.b16 %v487, %v485
        %v542 = vpack.c.b16 %v488, %v486
        %v543 = vpack.c.b16 %v491, %v489
        %v544 = vpack.c.b16 %v492, %v490
        %v545 = vpack.c.b16 %v495, %v493
        %v546 = vpack.c.b16 %v496, %v494
        %v547 = vpack.c.b16 %v499, %v497
        %v548 = vpack.c.b16 %v500, %v498
        %v549 = vpack.c.b16 %v503, %v501
        %v550 = vpack.c.b16 %v504, %v502
        %v551 = vpack.c.b16 %v507, %v505
        %v552 = vpack.c.b16 %v508, %v506
        %v553 = vpack.c.b16 %v511, %v509
        %v554 = vpack.c.b16 %v512, %v510
        %v555 = vpack.c.b16 %v515, %v513
        %v556 = vpack.c.b16 %v516, %v514
        %v557 = vpack.c.b16 %v519, %v517
        %v558 = vpack.c.b16 %v520, %v518
        %v559 = vpack.c.b16 %v523, %v521
        %v560 = vpack.c.b16 %v524, %v522
        %v561 = vpack.c.b16 %v527, %v525
        %v562 = vpack.c.b16 %v528, %v526
        %v563 = vpack.c.b16 %v531, %v529
        %v564 = vpack.c.b16 %v532, %v530
        %597 = vmatpush.bf16.msra.mxu0 %v547
        %598 = vmatpush.bf16.msra.mxu0 %v545
        %599 = vmatpush.bf16.msra.mxu0 %v543
        %600 = vmatpush.bf16.msra.mxu0 %v541
        %601 = vmatpush.bf16.msra.mxu0 %v539
        %602 = vmatpush.bf16.msra.mxu0 %v537
        %603 = vmatpush.bf16.msra.mxu0 %v535
        %604 = vmatpush.bf16.msra.mxu0 %v533
        %605 = vmatmul.bf16.gmra.mxu0 %v373
        %v606 = vpop.f32.mrf.mxu0
        %v607 = vadd.f32 0.0, %v606
        %v608 = vpop.f32.mrf.mxu0
        %v609 = vadd.f32 0.0, %v608
        %610 = vmatmul.bf16.gmra.mxu0 %v374
        %v611 = vpop.f32.mrf.mxu0
        %v612 = vadd.f32 0.0, %v611
        %v613 = vpop.f32.mrf.mxu0
        %v614 = vadd.f32 0.0, %v613
        %615 = vmatmul.bf16.gmra.mxu0 %v375
        %v616 = vpop.f32.mrf.mxu0
        %v617 = vadd.f32 0.0, %v616
        %v618 = vpop.f32.mrf.mxu0
        %v619 = vadd.f32 0.0, %v618
        %620 = vmatmul.bf16.gmra.mxu0 %v376
        %v621 = vpop.f32.mrf.mxu0
        %v622 = vadd.f32 0.0, %v621
        %v623 = vpop.f32.mrf.mxu0
        %v624 = vadd.f32 0.0, %v623
        %625 = vdwg.mxu0
        %626 = vmatpush.bf16.msra.mxu0 %v563
        %627 = vmatpush.bf16.msra.mxu0 %v561
        %628 = vmatpush.bf16.msra.mxu0 %v559
        %629 = vmatpush.bf16.msra.mxu0 %v557
        %630 = vmatpush.bf16.msra.mxu0 %v555
        %631 = vmatpush.bf16.msra.mxu0 %v553
        %632 = vmatpush.bf16.msra.mxu0 %v551
        %633 = vmatpush.bf16.msra.mxu0 %v549
        %634 = vmatmul.bf16.gmra.mxu0 %v397
        %v635 = vpop.f32.mrf.mxu0
        %v636 = vadd.f32 %v607, %v635
        %v637 = vpop.f32.mrf.mxu0
        %v638 = vadd.f32 %v609, %v637
        %639 = vmatmul.bf16.gmra.mxu0 %v398
        %v640 = vpop.f32.mrf.mxu0
        %v641 = vadd.f32 %v612, %v640
        %v642 = vpop.f32.mrf.mxu0
        %v643 = vadd.f32 %v614, %v642
        %644 = vmatmul.bf16.gmra.mxu0 %v399
        %v645 = vpop.f32.mrf.mxu0
        %v646 = vadd.f32 %v617, %v645
        %v647 = vpop.f32.mrf.mxu0
        %v648 = vadd.f32 %v619, %v647
        %649 = vmatmul.bf16.gmra.mxu0 %v400
        %v650 = vpop.f32.mrf.mxu0
        %v651 = vadd.f32 %v622, %v650
        %v652 = vpop.f32.mrf.mxu0
        %v653 = vadd.f32 %v624, %v652
        %654 = vdwg.mxu0
        %655 = vmatpush.bf16.msra.mxu0 %v548
        %656 = vmatpush.bf16.msra.mxu0 %v546
        %657 = vmatpush.bf16.msra.mxu0 %v544
        %658 = vmatpush.bf16.msra.mxu0 %v542
        %659 = vmatpush.bf16.msra.mxu0 %v540
        %660 = vmatpush.bf16.msra.mxu0 %v538
        %661 = vmatpush.bf16.msra.mxu0 %v536
        %662 = vmatpush.bf16.msra.mxu0 %v534
        %663 = vmatmul.bf16.gmra.mxu0 %v373
        %v664 = vpop.f32.mrf.mxu0
        %v665 = vadd.f32 0.0, %v664
        %v666 = vpop.f32.mrf.mxu0
        %v667 = vadd.f32 0.0, %v666
        %668 = vmatmul.bf16.gmra.mxu0 %v374
        %v669 = vpop.f32.mrf.mxu0
        %v670 = vadd.f32 0.0, %v669
        %v671 = vpop.f32.mrf.mxu0
        %v672 = vadd.f32 0.0, %v671
        %673 = vmatmul.bf16.gmra.mxu0 %v375
        %v674 = vpop.f32.mrf.mxu0
        %v675 = vadd.f32 0.0, %v674
        %v676 = vpop.f32.mrf.mxu0
        %v677 = vadd.f32 0.0, %v676
        %678 = vmatmul.bf16.gmra.mxu0 %v376
        %v679 = vpop.f32.mrf.mxu0
        %v680 = vadd.f32 0.0, %v679
        %v681 = vpop.f32.mrf.mxu0
        %v682 = vadd.f32 0.0, %v681
        %683 = vdwg.mxu0
        %684 = vmatpush.bf16.msra.mxu0 %v564
        %685 = vmatpush.bf16.msra.mxu0 %v562
        %686 = vmatpush.bf16.msra.mxu0 %v560
        %687 = vmatpush.bf16.msra.mxu0 %v558
        %688 = vmatpush.bf16.msra.mxu0 %v556
        %689 = vmatpush.bf16.msra.mxu0 %v554
        %690 = vmatpush.bf16.msra.mxu0 %v552
        %691 = vmatpush.bf16.msra.mxu0 %v550
        %692 = vmatmul.bf16.gmra.mxu0 %v397
        %v693 = vpop.f32.mrf.mxu0
        %v694 = vadd.f32 %v665, %v693
        %v695 = vpop.f32.mrf.mxu0
        %v696 = vadd.f32 %v667, %v695
        %697 = vmatmul.bf16.gmra.mxu0 %v398
        %v698 = vpop.f32.mrf.mxu0
        %v699 = vadd.f32 %v670, %v698
        %v700 = vpop.f32.mrf.mxu0
        %v701 = vadd.f32 %v672, %v700
        %702 = vmatmul.bf16.gmra.mxu0 %v399
        %v703 = vpop.f32.mrf.mxu0
        %v704 = vadd.f32 %v675, %v703
        %v705 = vpop.f32.mrf.mxu0
        %v706 = vadd.f32 %v677, %v705
        %707 = vmatmul.bf16.gmra.mxu0 %v400
        %v708 = vpop.f32.mrf.mxu0
        %v709 = vadd.f32 %v680, %v708
        %v710 = vpop.f32.mrf.mxu0
        %v711 = vadd.f32 %v682, %v710
        %712 = vdwg.mxu0
        %v713 = vrcp.pop %v636
        %v714 = vmul.f32 %v636, %v713
        %v715 = vsub.f32 1.0, %v714
        %v716 = vmul.f32 %v713, %v715
        %v717 = vadd.f32 %v713, %v716
        %vm718 = vweird.f32 %v636
        %vm719 = vweird.f32 %v713
        %vm720 = vmor %vm718, %vm719
        %v721 = vsel %vm720, %v713, %v717
        %v722 = vand.u32 2147483647, %v636
        %vm723 = vcmp.eq.f32.partialorder %v722, 8.507059e+37
        %v724 = vand.u32 %v636, 2147483648
        %v725 = vor.u32 1.1754944e-38, %v724
        %v726 = vsel %vm723, %v725, %v721
        %v727 = vrcp.pop %v638
        %v728 = vmul.f32 %v638, %v727
        %v729 = vsub.f32 1.0, %v728
        %v730 = vmul.f32 %v727, %v729
        %v731 = vadd.f32 %v727, %v730
        %vm732 = vweird.f32 %v638
        %vm733 = vweird.f32 %v727
        %vm734 = vmor %vm732, %vm733
        %v735 = vsel %vm734, %v727, %v731
        %v736 = vand.u32 2147483647, %v638
        %vm737 = vcmp.eq.f32.partialorder %v736, 8.507059e+37
        %v738 = vand.u32 %v638, 2147483648
        %v739 = vor.u32 1.1754944e-38, %v738
        %v740 = vsel %vm737, %v739, %v735
        %v741 = vrcp.pop %v641
        %v742 = vmul.f32 %v641, %v741
        %v743 = vsub.f32 1.0, %v742
        %v744 = vmul.f32 %v741, %v743
        %v745 = vadd.f32 %v741, %v744
        %vm746 = vweird.f32 %v641
        %vm747 = vweird.f32 %v741
        %vm748 = vmor %vm746, %vm747
        %v749 = vsel %vm748, %v741, %v745
        %v750 = vand.u32 2147483647, %v641
        %vm751 = vcmp.eq.f32.partialorder %v750, 8.507059e+37
        %v752 = vand.u32 %v641, 2147483648
        %v753 = vor.u32 1.1754944e-38, %v752
        %v754 = vsel %vm751, %v753, %v749
        %v755 = vrcp.pop %v643
        %v756 = vmul.f32 %v643, %v755
        %v757 = vsub.f32 1.0, %v756
        %v758 = vmul.f32 %v755, %v757
        %v759 = vadd.f32 %v755, %v758
        %vm760 = vweird.f32 %v643
        %vm761 = vweird.f32 %v755
        %vm762 = vmor %vm760, %vm761
        %v763 = vsel %vm762, %v755, %v759
        %v764 = vand.u32 2147483647, %v643
        %vm765 = vcmp.eq.f32.partialorder %v764, 8.507059e+37
        %v766 = vand.u32 %v643, 2147483648
        %v767 = vor.u32 1.1754944e-38, %v766
        %v768 = vsel %vm765, %v767, %v763
        %v769 = vrcp.pop %v646
        %v770 = vmul.f32 %v646, %v769
        %v771 = vsub.f32 1.0, %v770
        %v772 = vmul.f32 %v769, %v771
        %v773 = vadd.f32 %v769, %v772
        %vm774 = vweird.f32 %v646
        %vm775 = vweird.f32 %v769
        %vm776 = vmor %vm774, %vm775
        %v777 = vsel %vm776, %v769, %v773
        %v778 = vand.u32 2147483647, %v646
        %vm779 = vcmp.eq.f32.partialorder %v778, 8.507059e+37
        %v780 = vand.u32 %v646, 2147483648
        %v781 = vor.u32 1.1754944e-38, %v780
        %v782 = vsel %vm779, %v781, %v777
        %v783 = vrcp.pop %v648
        %v784 = vmul.f32 %v648, %v783
        %v785 = vsub.f32 1.0, %v784
        %v786 = vmul.f32 %v783, %v785
        %v787 = vadd.f32 %v783, %v786
        %vm788 = vweird.f32 %v648
        %vm789 = vweird.f32 %v783
        %vm790 = vmor %vm788, %vm789
        %v791 = vsel %vm790, %v783, %v787
        %v792 = vand.u32 2147483647, %v648
        %vm793 = vcmp.eq.f32.partialorder %v792, 8.507059e+37
        %v794 = vand.u32 %v648, 2147483648
        %v795 = vor.u32 1.1754944e-38, %v794
        %v796 = vsel %vm793, %v795, %v791
        %v797 = vrcp.pop %v651
        %v798 = vmul.f32 %v651, %v797
        %v799 = vsub.f32 1.0, %v798
        %v800 = vmul.f32 %v797, %v799
        %v801 = vadd.f32 %v797, %v800
        %vm802 = vweird.f32 %v651
        %vm803 = vweird.f32 %v797
        %vm804 = vmor %vm802, %vm803
        %v805 = vsel %vm804, %v797, %v801
        %v806 = vand.u32 2147483647, %v651
        %vm807 = vcmp.eq.f32.partialorder %v806, 8.507059e+37
        %v808 = vand.u32 %v651, 2147483648
        %v809 = vor.u32 1.1754944e-38, %v808
        %v810 = vsel %vm807, %v809, %v805
        %v811 = vrcp.pop %v653
        %v812 = vmul.f32 %v653, %v811
        %v813 = vsub.f32 1.0, %v812
        %v814 = vmul.f32 %v811, %v813
        %v815 = vadd.f32 %v811, %v814
        %vm816 = vweird.f32 %v653
        %vm817 = vweird.f32 %v811
        %vm818 = vmor %vm816, %vm817
        %v819 = vsel %vm818, %v811, %v815
        %v820 = vand.u32 2147483647, %v653
        %vm821 = vcmp.eq.f32.partialorder %v820, 8.507059e+37
        %v822 = vand.u32 %v653, 2147483648
        %v823 = vor.u32 1.1754944e-38, %v822
        %v824 = vsel %vm821, %v823, %v819
        %v825 = vmul.f32 %v694, %v726
        %v826 = vmul.f32 %v696, %v740
        %v827 = vmul.f32 %v699, %v754
        %v828 = vmul.f32 %v701, %v768
        %v829 = vmul.f32 %v704, %v782
        %v830 = vmul.f32 %v706, %v796
        %v831 = vmul.f32 %v709, %v810
        %v832 = vmul.f32 %v711, %v824
        %v833 = vsub.f32 1.0, %v825
        %v834 = vsub.f32 1.0, %v826
        %v835 = vsub.f32 1.0, %v827
        %v836 = vsub.f32 1.0, %v828
        %v837 = vsub.f32 1.0, %v829
        %v838 = vsub.f32 1.0, %v830
        %v839 = vsub.f32 1.0, %v831
        %v840 = vsub.f32 1.0, %v832
        %841 = vst [vmem:[%s192] sm:$0xff] %v833
        %842 = vst [vmem:[%s192 + $0x8] sm:$0xff] %v834
        %843 = vst [vmem:[%s192 + $0x10] sm:$0xff] %v835
        %844 = vst [vmem:[%s192 + $0x18] sm:$0xff] %v836
        %845 = vst [vmem:[%s192 + $0x20] sm:$0xff] %v837
        %846 = vst [vmem:[%s192 + $0x28] sm:$0xff] %v838
        %847 = vst [vmem:[%s192 + $0x30] sm:$0xff] %v839
        %848 = vst [vmem:[%s192 + $0x38] sm:$0xff] %v840
        %s849 = sand.u32 %s112, 1
        %s850 = scalar_lea.sflag [#allocation3], %s849
        %s851 = sand.u32 %s112, 1
        %s852 = smul.addr %s851, 64
        %s853 = scalar_lea.vmem [#allocation2], %s852
        // Predicated region
        $region33: #{cal_contrast_forward.3} parent=31 // pred_check
          %p854 = pneg %p122
        $region34: #{cal_contrast_forward.3} parent=31 // pred_check_branch
          %856 = sbr.rel (%p854) target = $region36
        $region35: #{cal_contrast_forward.3} parent=31 // pred_region
          %s857 = smul.u32 8, %s22
          %859 = vsyncadd %s850, 0
          %s860 = smul.addr %s21, 16
          %s861 = sadd.s32 %s857, %s860
          %s862 = smul.addr %s861, 8
          %s863 = scalar_lea.hbm %s3, %s862
          %s864 = sshll.u32 %s853, 4
          %s865 = int_to_ptr.vmem [resolvable:$true] %s864
          %s866 = sshll.u32 %s863, 4
          %s867 = int_to_ptr.hbm [resolvable:$true] %s866
          %872 = dma.vmem_to_hbm [thread:$0]  %s865, 1024, %s867, %s850, 128, 128, 8
        $region36: #{cal_contrast_forward.3} parent=31 // pred_fallthru
          _
      $region32: #{cal_contrast_forward.3} parent=5 // pred_fallthru
        _
      %p873 = scmp.le.s32.totalorder 2, %s12
      // Predicated region
      $region37: #{cal_contrast_forward.3} parent=5 // pred_check
        %p874 = pneg %p873
      $region38: #{cal_contrast_forward.3} parent=5 // pred_check_branch
        %876 = sbr.rel (%p874) target = $region40
      $region39: #{cal_contrast_forward.3} parent=5 // pred_region
        %s877 = ssub.s32 %s12, 2
        // Predicated region
        $region41: #{cal_contrast_forward.3} parent=39 // pred_check
          %p878 = pneg %p128
        $region42: #{cal_contrast_forward.3} parent=39 // pred_check_branch
          %880 = sbr.rel (%p878) target = $region44
        $region43: #{cal_contrast_forward.3} parent=39 // pred_region
          %s881 = sand.u32 %s113, 1
          %s882 = scalar_lea.sflag [#allocation3], %s881
          %s883 = sand.u32 %s113, 1
          %s884 = smul.addr %s883, 64
          %s885 = scalar_lea.vmem [#allocation2], %s884
          %887 = dma.done %s882, 1024
        $region44: #{cal_contrast_forward.3} parent=39 // pred_fallthru
          _
      $region40: #{cal_contrast_forward.3} parent=5 // pred_fallthru
        _
    $region6: #{cal_contrast_forward.3} parent=1 // loop_footer
      %s16 = sadd.s32 1, %s12
    $region7: #{cal_contrast_forward.3} parent=1 // loop_footer_branch
      %11 = sbr.rel target = $region3
    $region8: #{cal_contrast_forward.3} parent=1 // loop_exit
      _
    %888 = vsyncpa [#allocation3], 1
    %s889 = scalar_lea.sflag [#allocation3], 1
    %890 = vsyncpa %s889, 1

</llo_original>
